<compile_context>
chip_gen: v5e
topology: v5e:2x2
jax: 0.10.0
libtpu: 0.0.40
codegen_flags: <defaults>
</compile_context>

<pallas_src>
import jax
import jax.numpy as jnp
from jax import lax
from jax.experimental import pallas as pl
from jax.experimental.pallas import tpu as pltpu

_MIB = 1024 * 1024


def _round_up(x, m):
    return ((x + m - 1) // m) * m


def _pick_seed_tile(m):
    for t in (512, 256, 128):
        if m % t == 0:
            return t
    return m  # small / irregular seed counts: single tile over M


def _full_spec(shape):
    nd = len(shape)
    return pl.BlockSpec(shape, lambda b, t: (0,) * nd)


# ----------------------------------------------------------------------------
# Kernel A: backbone stand-in MLP + heads' first conv + BN partial statistics.
# Channel-major compute: every tile is (channels, TM) with seed points on lanes.
# ----------------------------------------------------------------------------
def _backbone_stats_kernel(xyz_ref, w0t_ref, b0_ref, w1t_ref, b1_ref, hw1t_ref,
                           sf_ref, stat_ref):
    xt = xyz_ref[0]                                                  # (3, TM) f32
    w0t = w0t_ref[...]                                               # (H, 3) f32

    # K=3 input layer: three broadcast FMAs on the VPU (MXU would be ~2% utilized)
    h0 = (w0t[:, 0:1] * xt[0:1, :] + w0t[:, 1:2] * xt[1:2, :]
          + w0t[:, 2:3] * xt[2:3, :] + b0_ref[...])                  # (H, TM)
    h0 = jnp.maximum(h0, 0.0).astype(jnp.bfloat16)

    # backbone output features, NCW orientation (bf16 MXU, f32 accumulate)
    sf = jnp.dot(w1t_ref[...], h0,
                 preferred_element_type=jnp.float32) + b1_ref[...]   # (256, TM) f32
    sf_ref[0] = sf

    # heads' first conv (channel-stacked fg|ctr -> 512).  Bias omitted: a conv
    # bias immediately before training-mode BatchNorm cancels exactly.
    conv = jnp.dot(hw1t_ref[...], sf.astype(jnp.bfloat16),
                   preferred_element_type=jnp.float32)               # (512, TM)

    # per-tile BatchNorm partial statistics over this tile's points
    psum = jnp.sum(conv, axis=1, keepdims=True)                      # (512, 1)
    psq = jnp.sum(conv * conv, axis=1, keepdims=True)                # (512, 1)
    stat_ref[0, 0] = jnp.concatenate([psum, psq], axis=1)            # (512, 2)


def backbone_stats_pallas(seed_xyz_t, p):
    B, _, M = seed_xyz_t.shape
    C = p["bb_w1t"].shape[0]       # 256
    C2 = p["head_w1t"].shape[0]    # 512
    TM = _pick_seed_tile(M)
    T = M // TM

    return pl.pallas_call(
        _backbone_stats_kernel,
        out_shape=(jax.ShapeDtypeStruct((B, C, M), jnp.float32),
                   jax.ShapeDtypeStruct((B, T, C2, 2), jnp.float32)),
        grid=(B, T),
        in_specs=[
            pl.BlockSpec((1, 3, TM), lambda b, t: (b, 0, t)),
            _full_spec(p["bb_w0t"].shape),
            _full_spec(p["bb_b0"].shape),
            _full_spec(p["bb_w1t"].shape),
            _full_spec(p["bb_b1"].shape),
            _full_spec(p["head_w1t"].shape),
        ],
        out_specs=(pl.BlockSpec((1, C, TM), lambda b, t: (b, 0, t)),
                   pl.BlockSpec((1, 1, C2, 2), lambda b, t: (b, t, 0, 0))),
        compiler_params=pltpu.CompilerParams(
            dimension_semantics=("parallel", "parallel"),
            vmem_limit_bytes=32 * _MIB),
    )(seed_xyz_t, p["bb_w0t"], p["bb_b0"], p["bb_w1t"], p["bb_b1"], p["head_w1t"])


# ----------------------------------------------------------------------------
# Kernel B: BN apply + ReLU + fused block-diagonal second conv.
# Head output emitted lane-dense in NCW (B, 8, M).
# ----------------------------------------------------------------------------
def _bn_head_kernel(sf_ref, ss_ref, hw1t_ref, w2t_ref, b2_ref, out_ref):
    sf = sf_ref[0].astype(jnp.bfloat16)                              # (256, TM)
    conv = jnp.dot(hw1t_ref[...], sf,
                   preferred_element_type=jnp.float32)               # (512, TM)
    scale = ss_ref[:, 0:1]                                           # (512, 1)
    shift = ss_ref[:, 1:2]                                           # (512, 1)
    hn = jnp.maximum(conv * scale + shift, 0.0)                      # BN + ReLU
    out_ref[0] = jnp.dot(w2t_ref[...], hn.astype(jnp.bfloat16),
                         preferred_element_type=jnp.float32) + b2_ref[...]   # (8, TM)


def bn_head_pallas(seed_features, scale_shift, p):
    B, C, M = seed_features.shape
    F = p["w2t_fused"].shape[0]    # 8
    TM = _pick_seed_tile(M)
    T = M // TM

    return pl.pallas_call(
        _bn_head_kernel,
        out_shape=jax.ShapeDtypeStruct((B, F, M), jnp.float32),
        grid=(B, T),
        in_specs=[
            pl.BlockSpec((1, C, TM), lambda b, t: (b, 0, t)),
            _full_spec(scale_shift.shape),
            _full_spec(p["head_w1t"].shape),
            _full_spec(p["w2t_fused"].shape),
            _full_spec(p["b2_fused"].shape),
        ],
        out_specs=pl.BlockSpec((1, F, TM), lambda b, t: (b, 0, t)),
        compiler_params=pltpu.CompilerParams(
            dimension_semantics=("parallel", "parallel"),
            vmem_limit_bytes=32 * _MIB),
    )(seed_features, scale_shift, p["head_w1t"], p["w2t_fused"], p["b2_fused"])


# ----------------------------------------------------------------------------
# Kernel C: three_nn + three_interpolate, tiled over the point axis.
# Points pre-transposed to (B, 3, N): tiles lane-dense, no Mosaic transpose of
# the point tile before the MXU, |p|^2 is a free sublane reduce.  Output is
# written directly in NCW (B, 8, N).
# ----------------------------------------------------------------------------
def _three_nn_interp_kernel(pts_ref, seeds_ref, feat_ref, out_ref):
    pts_t = pts_ref[0]                                               # (3, TN) f32
    seeds = seeds_ref[0]                                             # (M, 3) f32
    feat = feat_ref[0]                                               # (8, M) f32
    M = seeds.shape[0]
    TN = pts_t.shape[1]

    # squared distances (M, TN): |s|^2 + |p|^2 - 2 s.p
    dots = jnp.dot(seeds, pts_t, preferred_element_type=jnp.float32)  # (M, TN) MXU
    s2 = jnp.sum(seeds * seeds, axis=1, keepdims=True)                # (M, 1)
    p2 = jnp.sum(pts_t * pts_t, axis=0, keepdims=True)                # (1, TN) sublane reduce
    d2 = jnp.maximum(s2 + p2 - 2.0 * dots, 0.0)

    row = lax.broadcasted_iota(jnp.int32, (M, TN), 0)
    work = d2
    w_acc = jnp.zeros((M, TN), jnp.float32)
    norm = jnp.zeros((1, TN), jnp.float32)
    for _ in range(3):                                               # 3 nearest neighbors
        dmin2 = jnp.min(work, axis=0, keepdims=True)                 # (1, TN)
        idx_min = jnp.min(jnp.where(work == dmin2, row, M),
                          axis=0, keepdims=True)                     # ties -> smallest index
        mask = row == idx_min                                        # (M, TN), reused twice
        # 1/(sqrt(d2)+1e-8) ~= rsqrt(d2+1e-16): exact at d2==0, ~1e-8 rel. err otherwise
        recip = lax.rsqrt(dmin2 + 1e-16)                             # (1, TN), EUP
        w_acc = w_acc + jnp.where(mask, recip, 0.0)
        norm = norm + recip
        work = jnp.where(mask, jnp.float32(1e30), work)              # exclude chosen seed
    weights = w_acc * (1.0 / norm)                                   # exact divide, (1, TN) only

    # single fused interpolation matmul for both heads, NCW output (8, TN)
    out_ref[0] = jnp.dot(feat, weights, preferred_element_type=jnp.float32)


def three_nn_interpolate_pallas(point_xyz, seed_xyz, head_seed_ncw):
    B, N, _ = point_xyz.shape
    M = seed_xyz.shape[1]
    F = head_seed_ncw.shape[1]

    TN = 512 if N >= 512 else _round_up(N, 128)
    Np = _round_up(N, TN)
    pts_t = jnp.transpose(point_xyz, (0, 2, 1))                      # (B, 3, N)
    if Np != N:
        pts_t = jnp.pad(pts_t, ((0, 0), (0, 0), (0, Np - N)))        # pad points, slice outputs

    # ~8 live (M, TN) f32 temporaries in the 3-NN scan, plus small IO buffers
    vmem = min(max(8 * M * TN * 4 + 4 * _MIB, 32 * _MIB), 56 * _MIB)

    out = pl.pallas_call(
        _three_nn_interp_kernel,
        out_shape=jax.ShapeDtypeStruct((B, F, Np), jnp.float32),
        grid=(B, Np // TN),
        in_specs=[
            pl.BlockSpec((1, 3, TN), lambda b, n: (b, 0, n)),
            pl.BlockSpec((1, M, 3), lambda b, n: (b, 0, 0)),
            pl.BlockSpec((1, F, M), lambda b, n: (b, 0, 0)),
        ],
        out_specs=pl.BlockSpec((1, F, TN), lambda b, n: (b, 0, n)),
        compiler_params=pltpu.CompilerParams(
            dimension_semantics=("parallel", "parallel"),
            vmem_limit_bytes=vmem),
    )(pts_t, seed_xyz, head_seed_ncw)
    return out[:, :, :N] if Np != N else out


# ----------------------------------------------------------------------------
# Parameter init (deterministic, synthetic), packed/transposed for channel-major
# compute.  MXU-path weights in bf16, VPU-path / affine vectors in f32.
# ----------------------------------------------------------------------------
def init_params(key, hidden=128, feat_dim=256):
    ks = jax.random.split(key, 9)
    f32 = jnp.float32
    bf16 = jnp.bfloat16

    bb_w0 = 0.1 * jax.random.normal(ks[0], (3, hidden), f32)
    bb_b0 = 0.1 * jax.random.normal(ks[1], (hidden,), f32)
    bb_w1 = 0.1 * jax.random.normal(ks[2], (hidden, feat_dim), f32)
    bb_b1 = 0.1 * jax.random.normal(ks[3], (feat_dim,), f32)

    # heads: channel-stacked first conv [foreground | center] -> 512 channels.
    # First-conv bias is dropped: bias before training-mode BatchNorm cancels.
    head_w1 = 0.05 * jax.random.normal(ks[4], (feat_dim, 2 * feat_dim), f32)
    gamma = jnp.ones((2 * feat_dim,), f32)     # BN affine defaults
    beta = jnp.zeros((2 * feat_dim,), f32)
    fg_w2 = 0.05 * jax.random.normal(ks[5], (feat_dim, 2), f32)
    fg_b2 = 0.05 * jax.random.normal(ks[6], (2,), f32)
    ctr_w2 = 0.05 * jax.random.normal(ks[7], (feat_dim, 3), f32)
    ctr_b2 = 0.05 * jax.random.normal(ks[8], (3,), f32)

    # fused second convs: block-diagonal, transposed -> (8, 512): rows [fg(2)|ctr(3)|pad(3)]
    w2t = jnp.zeros((8, 2 * feat_dim), f32)
    w2t = w2t.at[0:2, :feat_dim].set(fg_w2.T)
    w2t = w2t.at[2:5, feat_dim:].set(ctr_w2.T)
    b2 = jnp.zeros((8, 1), f32)
    b2 = b2.at[0:2, 0].set(fg_b2)
    b2 = b2.at[2:5, 0].set(ctr_b2)

    return {
        "bb_w0t": bb_w0.T,                        # (H, 3)   f32 — VPU broadcast-FMA path
        "bb_b0": bb_b0.reshape(hidden, 1),        # (H, 1)   f32
        "bb_w1t": bb_w1.T.astype(bf16),           # (256, H) bf16 — MXU
        "bb_b1": bb_b1.reshape(feat_dim, 1),      # (256, 1) f32
        "head_w1t": head_w1.T.astype(bf16),       # (512, 256) bf16 — MXU
        "bn_gamma": gamma,                        # (512,)   f32
        "bn_beta": beta,                          # (512,)   f32
        "w2t_fused": w2t.astype(bf16),            # (8, 512) bf16 — MXU
        "b2_fused": b2,                           # (8, 1)   f32
    }


# ----------------------------------------------------------------------------
# Full forward glue.
# ----------------------------------------------------------------------------
def dsn_forward(end_points, params, num_seeds=32):
    pc = end_points["point_clouds"]                                  # (B, N, 3)
    B, N, _ = pc.shape
    # TODO(synk): strided subsample stands in for the undefined PointTransformer FPS.
    stride = max(N // num_seeds, 1)
    seed_xyz = pc[:, ::stride, :][:, :num_seeds, :]                  # (B, M, 3)
    M = seed_xyz.shape[1]
    seed_xyz_t = jnp.transpose(seed_xyz, (0, 2, 1))                  # (B, 3, M) — tiny

    # pass 1: backbone MLP + heads' first conv + BN partial statistics (tiled, pipelined)
    seed_features, stat_partial = backbone_stats_pallas(seed_xyz_t, params)

    # BN finalize on 512-wide vectors (negligible XLA work).  Training-mode batch
    # stats over all B*M seeds, biased variance (single-pass E[x^2]-E[x]^2; the
    # clamp guards the rare low-variance/large-mean channel).
    sums = jnp.sum(stat_partial, axis=(0, 1))                        # (512, 2)
    count = jnp.float32(B * M)
    mean = sums[:, 0] / count
    var = jnp.maximum(sums[:, 1] / count - mean * mean, 0.0)
    scale = params["bn_gamma"] * lax.rsqrt(var + 1e-5)
    shift = params["bn_beta"] - mean * scale
    scale_shift = jnp.stack([scale, shift], axis=1)                  # (512, 2)

    # pass 2: BN apply + ReLU + fused block-diagonal second conv -> (B, 8, M) NCW
    head_seed = bn_head_pallas(seed_features, scale_shift, params)

    # three_nn + three_interpolate, output directly in NCW (B, 8, N)
    out_ncw = three_nn_interpolate_pallas(pc, seed_xyz, head_seed)

    out = dict(end_points)
    out["seed_xyz"] = seed_xyz
    out["seed_features"] = seed_features                             # (B, 256, M) NCW
    out["foreground_logits"] = out_ncw[:, 0:2, :]                    # (B, 2, N)   NCW
    out["center_offsets"] = out_ncw[:, 2:5, :]                       # (B, 3, N)   NCW
    return out


if __name__ == "__main__":
    key = jax.random.PRNGKey(0)
    k_pc, k_params = jax.random.split(key)
    B, N, M = 2, 128, 32
    point_clouds = jax.random.normal(k_pc, (B, N, 3), jnp.float32)
    params = init_params(k_params)

    end_points = {"point_clouds": point_clouds}
    end_points = dsn_forward(end_points, params, num_seeds=M)

    fg = jax.block_until_ready(end_points["foreground_logits"])
    ctr = jax.block_until_ready(end_points["center_offsets"])
    sf = jax.block_until_ready(end_points["seed_features"])

    assert fg.shape == (B, 2, N) and fg.dtype == jnp.float32
    assert ctr.shape == (B, 3, N) and ctr.dtype == jnp.float32
    assert sf.shape == (B, 256, M) and sf.dtype == jnp.float32
    assert bool(jnp.all(jnp.isfinite(fg))) and bool(jnp.all(jnp.isfinite(ctr)))
    assert bool(jnp.all(jnp.isfinite(sf)))
    print("KERNEL_OK")
</pallas_src>

<mosaic_0001>
module attributes {stable_mosaic.version = 11 : i64} {
  func.func @_backbone_stats_kernel(%arg0: i32, %arg1: i32, %arg2: memref<1x3x32xf32, #tpu.memory_space<vmem>>, %arg3: memref<128x3xf32, #tpu.memory_space<vmem>>, %arg4: memref<128x1xf32, #tpu.memory_space<vmem>>, %arg5: memref<256x128xbf16, #tpu.memory_space<vmem>>, %arg6: memref<256x1xf32, #tpu.memory_space<vmem>>, %arg7: memref<512x256xbf16, #tpu.memory_space<vmem>>, %arg8: memref<1x256x32xf32, #tpu.memory_space<vmem>>, %arg9: memref<1x1x512x2xf32, #tpu.memory_space<vmem>>) attributes {dimension_semantics = [#tpu.dimension_semantics<parallel>, #tpu.dimension_semantics<parallel>], iteration_bounds = array<i64: 2, 1>, scalar_prefetch = 0 : i64, scratch_operands = 0 : i64, tpu.core_type = #tpu.core_type<tc>, window_params = [{transform_indices = @transform_0, window_bounds = array<i64: 1, 3, 32>}, {pipeline_mode = #tpu.pipeline_mode<synchronous>, transform_indices = @transform_1, window_bounds = array<i64: 128, 3>}, {pipeline_mode = #tpu.pipeline_mode<synchronous>, transform_indices = @transform_2, window_bounds = array<i64: 128, 1>}, {pipeline_mode = #tpu.pipeline_mode<synchronous>, transform_indices = @transform_3, window_bounds = array<i64: 256, 128>}, {pipeline_mode = #tpu.pipeline_mode<synchronous>, transform_indices = @transform_4, window_bounds = array<i64: 256, 1>}, {pipeline_mode = #tpu.pipeline_mode<synchronous>, transform_indices = @transform_5, window_bounds = array<i64: 512, 256>}, {transform_indices = @transform_6, window_bounds = array<i64: 1, 256, 32>}, {transform_indices = @transform_7, window_bounds = array<i64: 1, 1, 512, 2>}]} {
    %c0 = arith.constant 0 : index
    %c0_0 = arith.constant 0 : index
    %c0_1 = arith.constant 0 : index
    %0 = vector.load %arg2[%c0, %c0_0, %c0_1] : memref<1x3x32xf32, #tpu.memory_space<vmem>>, vector<1x3x32xf32>
    %1 = vector.shape_cast %0 : vector<1x3x32xf32> to vector<3x32xf32>
    %c0_2 = arith.constant 0 : index
    %c0_3 = arith.constant 0 : index
    %2 = vector.load %arg3[%c0_2, %c0_3] : memref<128x3xf32, #tpu.memory_space<vmem>>, vector<128x3xf32>
    %3 = vector.extract_strided_slice %2 {offsets = [0, 0], sizes = [128, 1], strides = [1, 1]} : vector<128x3xf32> to vector<128x1xf32>
    %4 = vector.extract_strided_slice %1 {offsets = [0, 0], sizes = [1, 32], strides = [1, 1]} : vector<3x32xf32> to vector<1x32xf32>
    %5 = vector.broadcast %3 : vector<128x1xf32> to vector<128x32xf32>
    %6 = vector.broadcast %4 : vector<1x32xf32> to vector<128x32xf32>
    %7 = arith.mulf %5, %6 : vector<128x32xf32>
    %8 = vector.extract_strided_slice %2 {offsets = [0, 1], sizes = [128, 1], strides = [1, 1]} : vector<128x3xf32> to vector<128x1xf32>
    %9 = vector.extract_strided_slice %1 {offsets = [1, 0], sizes = [1, 32], strides = [1, 1]} : vector<3x32xf32> to vector<1x32xf32>
    %10 = vector.broadcast %8 : vector<128x1xf32> to vector<128x32xf32>
    %11 = vector.broadcast %9 : vector<1x32xf32> to vector<128x32xf32>
    %12 = arith.mulf %10, %11 : vector<128x32xf32>
    %13 = arith.addf %7, %12 : vector<128x32xf32>
    %14 = vector.extract_strided_slice %2 {offsets = [0, 2], sizes = [128, 1], strides = [1, 1]} : vector<128x3xf32> to vector<128x1xf32>
    %15 = vector.extract_strided_slice %1 {offsets = [2, 0], sizes = [1, 32], strides = [1, 1]} : vector<3x32xf32> to vector<1x32xf32>
    %16 = vector.broadcast %14 : vector<128x1xf32> to vector<128x32xf32>
    %17 = vector.broadcast %15 : vector<1x32xf32> to vector<128x32xf32>
    %18 = arith.mulf %16, %17 : vector<128x32xf32>
    %19 = arith.addf %13, %18 : vector<128x32xf32>
    %c0_4 = arith.constant 0 : index
    %c0_5 = arith.constant 0 : index
    %20 = vector.load %arg4[%c0_4, %c0_5] : memref<128x1xf32, #tpu.memory_space<vmem>>, vector<128x1xf32>
    %21 = vector.broadcast %20 : vector<128x1xf32> to vector<128x32xf32>
    %22 = arith.addf %19, %21 : vector<128x32xf32>
    %cst = arith.constant 0.000000e+00 : f32
    %23 = vector.broadcast %cst : f32 to vector<128x32xf32>
    %24 = arith.maximumf %22, %23 : vector<128x32xf32>
    %25 = arith.truncf %24 : vector<128x32xf32> to vector<128x32xbf16>
    %c0_6 = arith.constant 0 : index
    %c0_7 = arith.constant 0 : index
    %26 = vector.load %arg5[%c0_6, %c0_7] : memref<256x128xbf16, #tpu.memory_space<vmem>>, vector<256x128xbf16>
    %cst_8 = arith.constant dense<0.000000e+00> : vector<256x32xf32>
    %27 = tpu.matmul %26, %25, %cst_8 {dimension_numbers = #tpu.dot_dimension_numbers<[1], [0], [0], [1], [0, 0, 1, 1], [], []>} : vector<256x128xbf16>, vector<128x32xbf16>, vector<256x32xf32> -> vector<256x32xf32>
    %c0_9 = arith.constant 0 : index
    %c0_10 = arith.constant 0 : index
    %28 = vector.load %arg6[%c0_9, %c0_10] : memref<256x1xf32, #tpu.memory_space<vmem>>, vector<256x1xf32>
    %29 = vector.broadcast %28 : vector<256x1xf32> to vector<256x32xf32>
    %30 = arith.addf %27, %29 : vector<256x32xf32>
    %c0_11 = arith.constant 0 : index
    %c0_12 = arith.constant 0 : index
    %c0_13 = arith.constant 0 : index
    %31 = vector.load %arg8[%c0_11, %c0_12, %c0_13] : memref<1x256x32xf32, #tpu.memory_space<vmem>>, vector<1x256x32xf32>
    %32 = vector.shape_cast %31 : vector<1x256x32xf32> to vector<256x32xf32>
    %33 = vector.shape_cast %30 : vector<256x32xf32> to vector<1x256x32xf32>
    tpu.vector_store %arg8[%c0_11, %c0_12, %c0_13], %33 {strides = array<i32>} : memref<1x256x32xf32, #tpu.memory_space<vmem>>, vector<1x256x32xf32>,
    %c0_14 = arith.constant 0 : index
    %c0_15 = arith.constant 0 : index
    %34 = vector.load %arg7[%c0_14, %c0_15] : memref<512x256xbf16, #tpu.memory_space<vmem>>, vector<512x256xbf16>
    %35 = arith.truncf %30 : vector<256x32xf32> to vector<256x32xbf16>
    %cst_16 = arith.constant dense<0.000000e+00> : vector<512x32xf32>
    %36 = tpu.matmul %34, %35, %cst_16 {dimension_numbers = #tpu.dot_dimension_numbers<[1], [0], [0], [1], [0, 0, 1, 1], [], []>} : vector<512x256xbf16>, vector<256x32xbf16>, vector<512x32xf32> -> vector<512x32xf32>
    %cst_17 = arith.constant dense<0.000000e+00> : vector<512xf32>
    %37 = vector.multi_reduction <add>, %36, %cst_17 [1] : vector<512x32xf32> to vector<512xf32>
    %38 = vector.shape_cast %37 : vector<512xf32> to vector<512x1xf32>
    %39 = arith.mulf %36, %36 : vector<512x32xf32>
    %cst_18 = arith.constant dense<0.000000e+00> : vector<512xf32>
    %40 = vector.multi_reduction <add>, %39, %cst_18 [1] : vector<512x32xf32> to vector<512xf32>
    %41 = vector.shape_cast %40 : vector<512xf32> to vector<512x1xf32>
    %42 = tpu.concatenate %38, %41 in 1 : vector<512x1xf32>, vector<512x1xf32> -> vector<512x2xf32>
    %c0_19 = arith.constant 0 : index
    %c0_20 = arith.constant 0 : index
    %c0_21 = arith.constant 0 : index
    %c0_22 = arith.constant 0 : index
    %43 = vector.load %arg9[%c0_19, %c0_20, %c0_21, %c0_22] : memref<1x1x512x2xf32, #tpu.memory_space<vmem>>, vector<1x1x512x2xf32>
    %44 = vector.shape_cast %43 : vector<1x1x512x2xf32> to vector<512x2xf32>
    %45 = vector.shape_cast %42 : vector<512x2xf32> to vector<1x1x512x2xf32>
    tpu.vector_store %arg9[%c0_19, %c0_20, %c0_21, %c0_22], %45 {strides = array<i32>} : memref<1x1x512x2xf32, #tpu.memory_space<vmem>>, vector<1x1x512x2xf32>,
    return
  }
  func.func @transform_0(%arg0: i32, %arg1: i32) -> (i32, i32, i32) {
    %c0_i32 = arith.constant 0 : i32
    %c0_i32_0 = arith.constant 0 : i32
    return %arg0, %c0_i32, %arg1 : i32, i32, i32
  }
  func.func @transform_1(%arg0: i32, %arg1: i32) -> (i32, i32) {
    %c0_i32 = arith.constant 0 : i32
    %c0_i32_0 = arith.constant 0 : i32
    %c0_i32_1 = arith.constant 0 : i32
    return %c0_i32, %c0_i32_0 : i32, i32
  }
  func.func @transform_2(%arg0: i32, %arg1: i32) -> (i32, i32) {
    %c0_i32 = arith.constant 0 : i32
    %c0_i32_0 = arith.constant 0 : i32
    %c0_i32_1 = arith.constant 0 : i32
    return %c0_i32, %c0_i32_0 : i32, i32
  }
  func.func @transform_3(%arg0: i32, %arg1: i32) -> (i32, i32) {
    %c0_i32 = arith.constant 0 : i32
    %c0_i32_0 = arith.constant 0 : i32
    %c0_i32_1 = arith.constant 0 : i32
    return %c0_i32, %c0_i32_0 : i32, i32
  }
  func.func @transform_4(%arg0: i32, %arg1: i32) -> (i32, i32) {
    %c0_i32 = arith.constant 0 : i32
    %c0_i32_0 = arith.constant 0 : i32
    %c0_i32_1 = arith.constant 0 : i32
    return %c0_i32, %c0_i32_0 : i32, i32
  }
  func.func @transform_5(%arg0: i32, %arg1: i32) -> (i32, i32) {
    %c0_i32 = arith.constant 0 : i32
    %c0_i32_0 = arith.constant 0 : i32
    %c0_i32_1 = arith.constant 0 : i32
    return %c0_i32, %c0_i32_0 : i32, i32
  }
  func.func @transform_6(%arg0: i32, %arg1: i32) -> (i32, i32, i32) {
    %c0_i32 = arith.constant 0 : i32
    %c0_i32_0 = arith.constant 0 : i32
    return %arg0, %c0_i32, %arg1 : i32, i32, i32
  }
  func.func @transform_7(%arg0: i32, %arg1: i32) -> (i32, i32, i32, i32) {
    %c0_i32 = arith.constant 0 : i32
    %c0_i32_0 = arith.constant 0 : i32
    %c0_i32_1 = arith.constant 0 : i32
    return %arg0, %arg1, %c0_i32, %c0_i32_0 : i32, i32, i32, i32
  }
}

</mosaic_0001>

<llo_original>
// kernel: tpu_custom_call.1
$region0: #{tpu_custom_call.1}
  #allocation0 [shape = 'u32[]', space=smem, size = 0x4, offset = 0x4, fixed_abs, tag = 'smem constant byte address 0x4 - core index']
  #allocation1 [shape = 'u32[72,128]{1,0:T(1,128)}', space=vmem, size = 0x9000, scoped, tag = 'internal scratch']
  %s0 = inlined_call_operand.vmem [shape: f32[2,3,32], index: 0, kind: input, shape index: {}]
  %s1 = inlined_call_operand.vmem [shape: f32[128,3], index: 1, kind: input, shape index: {}]
  %s2 = inlined_call_operand.vmem [shape: f32[128,1], index: 2, kind: input, shape index: {}]
  %s3 = inlined_call_operand.vmem [shape: bf16[256,128], index: 3, kind: input, shape index: {}]
  %s4 = inlined_call_operand.vmem [shape: f32[256,1], index: 4, kind: input, shape index: {}]
  %s5 = inlined_call_operand.hbm [shape: bf16[512,256], index: 5, kind: input, shape index: {}]
  %s6 = inlined_call_operand.vmem [shape: f32[2,256,32], index: 6, kind: output, shape index: {0}]
  %s7 = inlined_call_operand.vmem [shape: f32[2,1,512,2], index: 7, kind: output, shape index: {1}]
  %8 = xla_tuple %s6, %s7
  %s9 = sld [smem:[#allocation0]]
  $region69: #{tpu_custom_call.1} parent=0
    _
  %s11 = ssub.s32 1, %s9
  %s12 = scalar_select 0, %s11, %s9
  $region1: #{tpu_custom_call.1} parent=0
    #allocation2 [shape = 'u8[262144]{0}', space=vmem, size = 0x40000, scoped, tag = 'input window, operand 5, single buffered']
    #allocation3 [shape = 's32[2]{0}', space=sflag, size = 0x8, scoped, tag = 'scoped memory for tpu_custom_call.1']
    %13 = vsyncpa [#allocation3], 0
    loop: start=0, step=1, limit=4
    $region2: #{tpu_custom_call.1} parent=1 // loop_pre_header
      _
    $region3: #{tpu_custom_call.1} parent=1 // loop_header
      %s15 = sphi 0, %s19
      %p16 = scmp.ge.s32.totalorder %s15, 4
      %s22 = sphi 0, %s34
      %s23 = sphi 0, %s30
      %s24 = sphi 0, %s22
      %s25 = sphi 0, %s23
      %s26 = sphi 0, %s24
      %s27 = sphi 0, %s25
      %s39 = sphi 0, %s41
      %s42 = sphi 0, %s39
      %s43 = sphi 0, %s42
      %s59 = sphi 0, %s43
      %s63 = sphi 0, %s63
      %s65 = sphi 0, %s63
      %s66 = sphi 0, %s65
      %s80 = sphi 0, %s66
      %s84 = sphi 0, %s84
      %s86 = sphi 0, %s84
      %s87 = sphi 0, %s86
      %s101 = sphi 0, %s87
      %s105 = sphi 0, %s105
      %s107 = sphi 0, %s105
      %s108 = sphi 0, %s107
      %s122 = sphi 0, %s108
      %s126 = sphi 0, %s126
      %s128 = sphi 0, %s126
      %s129 = sphi 0, %s128
      %s143 = sphi 0, %s129
      %s147 = sphi 0, %s147
      %s149 = sphi 0, %s147
      %s150 = sphi 0, %s149
      %s164 = sphi 0, %s150
      %s172 = sphi 0, %s174
      %s175 = sphi 0, %s172
      %s176 = sphi 0, %s175
      %s192 = sphi 0, %s176
      %s200 = sphi 0, %s202
      %s203 = sphi 0, %s200
      %s204 = sphi 0, %s203
      %s220 = sphi 0, %s204
    $region4: #{tpu_custom_call.1} parent=1 // loop_header_branch
      %18 = sbr.rel (%p16) target = $region8
    $region5: #{tpu_custom_call.1} parent=1 // loop_body
      %s20 = ssub.s32 %s15, 1
      %s21 = ssub.s32 %s15, 2
      %s28 = sadd.s32 1, %s23
      %p29 = scmp.ge.s32.totalorder %s28, 1
      %s30 = scalar_select %p29, 0, %s28
      %s31 = sadd.s32 1, %s22
      %s32 = scalar_select %p29, %s31, %s22
      %p33 = scmp.ge.s32.totalorder %s32, 2
      %s34 = scalar_select %p33, 0, %s32
      %s35 = ssub.s32 %s22, %s34
      %s36 = ssub.s32 %s23, %s30
      %s37 = sor.u32 %s35, %s36
      %p38 = scmp.eq.s32.totalorder %s37, 0
      %s40 = sadd.s32 %s39, 1
      %s41 = scalar_select %p38, %s39, %s40
      %p44 = pneg %p38
      %p45 = scmp.eq.s32.totalorder %s15, 1
      %p46 = por %p44, %p45
      %p47 = scmp.ne.s32.totalorder %s39, %s42
      %p48 = scmp.eq.s32.totalorder %s15, 0
      %p49 = por %p47, %p48
      %p50 = scmp.ne.s32.totalorder %s39, %s42
      %p51 = scmp.eq.s32.totalorder %s20, 1
      %p52 = por %p50, %p51
      %p53 = scmp.ne.s32.totalorder %s42, %s43
      %p54 = scmp.eq.s32.totalorder %s20, 0
      %p55 = por %p53, %p54
      %p56 = scmp.ne.s32.totalorder %s42, %s43
      %p57 = scmp.eq.s32.totalorder %s21, 1
      %p58 = por %p56, %p57
      %p60 = scmp.ne.s32.totalorder %s43, %s59
      %p61 = scmp.eq.s32.totalorder %s21, 0
      %p62 = por %p60, %p61
      %s64 = sadd.s32 %s63, 1
      %p67 = scmp.eq.s32.totalorder %s15, 1
      %p68 = scmp.ne.s32.totalorder %s63, %s65
      %p69 = scmp.eq.s32.totalorder %s15, 0
      %p70 = por %p68, %p69
      %p71 = scmp.ne.s32.totalorder %s63, %s65
      %p72 = scmp.eq.s32.totalorder %s20, 1
      %p73 = por %p71, %p72
      %p74 = scmp.ne.s32.totalorder %s65, %s66
      %p75 = scmp.eq.s32.totalorder %s20, 0
      %p76 = por %p74, %p75
      %p77 = scmp.ne.s32.totalorder %s65, %s66
      %p78 = scmp.eq.s32.totalorder %s21, 1
      %p79 = por %p77, %p78
      %p81 = scmp.ne.s32.totalorder %s66, %s80
      %p82 = scmp.eq.s32.totalorder %s21, 0
      %p83 = por %p81, %p82
      %s85 = sadd.s32 %s84, 1
      %p88 = scmp.eq.s32.totalorder %s15, 1
      %p89 = scmp.ne.s32.totalorder %s84, %s86
      %p90 = scmp.eq.s32.totalorder %s15, 0
      %p91 = por %p89, %p90
      %p92 = scmp.ne.s32.totalorder %s84, %s86
      %p93 = scmp.eq.s32.totalorder %s20, 1
      %p94 = por %p92, %p93
      %p95 = scmp.ne.s32.totalorder %s86, %s87
      %p96 = scmp.eq.s32.totalorder %s20, 0
      %p97 = por %p95, %p96
      %p98 = scmp.ne.s32.totalorder %s86, %s87
      %p99 = scmp.eq.s32.totalorder %s21, 1
      %p100 = por %p98, %p99
      %p102 = scmp.ne.s32.totalorder %s87, %s101
      %p103 = scmp.eq.s32.totalorder %s21, 0
      %p104 = por %p102, %p103
      %s106 = sadd.s32 %s105, 1
      %p109 = scmp.eq.s32.totalorder %s15, 1
      %p110 = scmp.ne.s32.totalorder %s105, %s107
      %p111 = scmp.eq.s32.totalorder %s15, 0
      %p112 = por %p110, %p111
      %p113 = scmp.ne.s32.totalorder %s105, %s107
      %p114 = scmp.eq.s32.totalorder %s20, 1
      %p115 = por %p113, %p114
      %p116 = scmp.ne.s32.totalorder %s107, %s108
      %p117 = scmp.eq.s32.totalorder %s20, 0
      %p118 = por %p116, %p117
      %p119 = scmp.ne.s32.totalorder %s107, %s108
      %p120 = scmp.eq.s32.totalorder %s21, 1
      %p121 = por %p119, %p120
      %p123 = scmp.ne.s32.totalorder %s108, %s122
      %p124 = scmp.eq.s32.totalorder %s21, 0
      %p125 = por %p123, %p124
      %s127 = sadd.s32 %s126, 1
      %p130 = scmp.eq.s32.totalorder %s15, 1
      %p131 = scmp.ne.s32.totalorder %s126, %s128
      %p132 = scmp.eq.s32.totalorder %s15, 0
      %p133 = por %p131, %p132
      %p134 = scmp.ne.s32.totalorder %s126, %s128
      %p135 = scmp.eq.s32.totalorder %s20, 1
      %p136 = por %p134, %p135
      %p137 = scmp.ne.s32.totalorder %s128, %s129
      %p138 = scmp.eq.s32.totalorder %s20, 0
      %p139 = por %p137, %p138
      %p140 = scmp.ne.s32.totalorder %s128, %s129
      %p141 = scmp.eq.s32.totalorder %s21, 1
      %p142 = por %p140, %p141
      %p144 = scmp.ne.s32.totalorder %s129, %s143
      %p145 = scmp.eq.s32.totalorder %s21, 0
      %p146 = por %p144, %p145
      %s148 = sadd.s32 %s147, 1
      %p151 = scmp.eq.s32.totalorder %s15, 1
      %p152 = scmp.ne.s32.totalorder %s147, %s149
      %p153 = scmp.eq.s32.totalorder %s15, 0
      %p154 = por %p152, %p153
      %p155 = scmp.ne.s32.totalorder %s147, %s149
      %p156 = scmp.eq.s32.totalorder %s20, 1
      %p157 = por %p155, %p156
      %p158 = scmp.ne.s32.totalorder %s149, %s150
      %p159 = scmp.eq.s32.totalorder %s20, 0
      %p160 = por %p158, %p159
      %p161 = scmp.ne.s32.totalorder %s149, %s150
      %p162 = scmp.eq.s32.totalorder %s21, 1
      %p163 = por %p161, %p162
      %p165 = scmp.ne.s32.totalorder %s150, %s164
      %p166 = scmp.eq.s32.totalorder %s21, 0
      %p167 = por %p165, %p166
      %s168 = ssub.s32 %s22, %s34
      %s169 = ssub.s32 %s23, %s30
      %s170 = sor.u32 %s168, %s169
      %p171 = scmp.eq.s32.totalorder %s170, 0
      %s173 = sadd.s32 %s172, 1
      %s174 = scalar_select %p171, %s172, %s173
      %p177 = pneg %p171
      %p178 = scmp.eq.s32.totalorder %s15, 1
      %p179 = por %p177, %p178
      %p180 = scmp.ne.s32.totalorder %s172, %s175
      %p181 = scmp.eq.s32.totalorder %s15, 0
      %p182 = por %p180, %p181
      %p183 = scmp.ne.s32.totalorder %s172, %s175
      %p184 = scmp.eq.s32.totalorder %s20, 1
      %p185 = por %p183, %p184
      %p186 = scmp.ne.s32.totalorder %s175, %s176
      %p187 = scmp.eq.s32.totalorder %s20, 0
      %p188 = por %p186, %p187
      %p189 = scmp.ne.s32.totalorder %s175, %s176
      %p190 = scmp.eq.s32.totalorder %s21, 1
      %p191 = por %p189, %p190
      %p193 = scmp.ne.s32.totalorder %s176, %s192
      %p194 = scmp.eq.s32.totalorder %s21, 0
      %p195 = por %p193, %p194
      %s196 = ssub.s32 %s22, %s34
      %s197 = ssub.s32 %s23, %s30
      %s198 = sor.u32 %s196, %s197
      %p199 = scmp.eq.s32.totalorder %s198, 0
      %s201 = sadd.s32 %s200, 1
      %s202 = scalar_select %p199, %s200, %s201
      %p205 = pneg %p199
      %p206 = scmp.eq.s32.totalorder %s15, 1
      %p207 = por %p205, %p206
      %p208 = scmp.ne.s32.totalorder %s200, %s203
      %p209 = scmp.eq.s32.totalorder %s15, 0
      %p210 = por %p208, %p209
      %p211 = scmp.ne.s32.totalorder %s200, %s203
      %p212 = scmp.eq.s32.totalorder %s20, 1
      %p213 = por %p211, %p212
      %p214 = scmp.ne.s32.totalorder %s203, %s204
      %p215 = scmp.eq.s32.totalorder %s20, 0
      %p216 = por %p214, %p215
      %p217 = scmp.ne.s32.totalorder %s203, %s204
      %p218 = scmp.eq.s32.totalorder %s21, 1
      %p219 = por %p217, %p218
      %p221 = scmp.ne.s32.totalorder %s204, %s220
      %p222 = scmp.eq.s32.totalorder %s21, 0
      %p223 = por %p221, %p222
      %p224 = scmp.le.s32.totalorder 1, %s15
      %p225 = scmp.lt.s32.totalorder %s15, 3
      %p226 = pnand %p224, %p225
      %p227 = pneg %p226
      // Predicated region
      $region9: #{tpu_custom_call.1} parent=5 // pred_check
        _
      $region10: #{tpu_custom_call.1} parent=5 // pred_check_branch
        %229 = sbr.rel (%p226) target = $region12
      $region11: #{tpu_custom_call.1} parent=5 // pred_region
        %s230 = ssub.s32 %s15, 1
        // Predicated region
        $region13: #{tpu_custom_call.1} parent=11 // pred_check
          %p231 = pneg %p76
        $region14: #{tpu_custom_call.1} parent=11 // pred_check_branch
          %233 = sbr.rel (%p231) target = $region16
        $region15: #{tpu_custom_call.1} parent=11 // pred_region
          _
        $region16: #{tpu_custom_call.1} parent=11 // pred_fallthru
          _
        // Predicated region
        $region17: #{tpu_custom_call.1} parent=11 // pred_check
          %p234 = pneg %p97
        $region18: #{tpu_custom_call.1} parent=11 // pred_check_branch
          %236 = sbr.rel (%p234) target = $region20
        $region19: #{tpu_custom_call.1} parent=11 // pred_region
          _
        $region20: #{tpu_custom_call.1} parent=11 // pred_fallthru
          _
        // Predicated region
        $region21: #{tpu_custom_call.1} parent=11 // pred_check
          %p237 = pneg %p118
        $region22: #{tpu_custom_call.1} parent=11 // pred_check_branch
          %239 = sbr.rel (%p237) target = $region24
        $region23: #{tpu_custom_call.1} parent=11 // pred_region
          _
        $region24: #{tpu_custom_call.1} parent=11 // pred_fallthru
          _
        // Predicated region
        $region25: #{tpu_custom_call.1} parent=11 // pred_check
          %p240 = pneg %p139
        $region26: #{tpu_custom_call.1} parent=11 // pred_check_branch
          %242 = sbr.rel (%p240) target = $region28
        $region27: #{tpu_custom_call.1} parent=11 // pred_region
          _
        $region28: #{tpu_custom_call.1} parent=11 // pred_fallthru
          _
        // Predicated region
        $region29: #{tpu_custom_call.1} parent=11 // pred_check
          %p243 = pneg %p160
        $region30: #{tpu_custom_call.1} parent=11 // pred_check_branch
          %245 = sbr.rel (%p243) target = $region32
        $region31: #{tpu_custom_call.1} parent=11 // pred_region
          %247 = vsyncadd [#allocation3], 0
          %s248 = sshll.u32 %s5, 4
          %s249 = int_to_ptr.hbm [resolvable:$true] %s248
          %s250 = sshll.u32 [#allocation2], 4
          %s251 = int_to_ptr.vmem [resolvable:$true] %s250
          %256 = dma.hbm_to_vmem [thread:$0]  %s249, 8192, %s251, [#allocation3], 128, 128, 8
        $region32: #{tpu_custom_call.1} parent=11 // pred_fallthru
          _
      $region12: #{tpu_custom_call.1} parent=5 // pred_fallthru
        _
      %p257 = scmp.lt.s32.totalorder %s15, 2
      // Predicated region
      $region33: #{tpu_custom_call.1} parent=5 // pred_check
        %p258 = pneg %p257
      $region34: #{tpu_custom_call.1} parent=5 // pred_check_branch
        %260 = sbr.rel (%p258) target = $region36
      $region35: #{tpu_custom_call.1} parent=5 // pred_region
        // Predicated region
        $region37: #{tpu_custom_call.1} parent=35 // pred_check
          %p261 = pneg %p49
        $region38: #{tpu_custom_call.1} parent=35 // pred_check_branch
          %263 = sbr.rel (%p261) target = $region40
        $region39: #{tpu_custom_call.1} parent=35 // pred_region
          %p264 = scmp.lt.s32.totalorder %s22, 1
          %s265 = scalar_select %p264, %s22, 1
          %p266 = scmp.lt.s32.totalorder %s23, 0
          %s267 = scalar_select %p266, %s23, 0
          %s268 = sadd.s32 %s267, %s265
          %s269 = smul.addr %s268, 4
          %s270 = scalar_lea.vmem %s0, %s269
        $region40: #{tpu_custom_call.1} parent=35 // pred_fallthru
          _
      $region36: #{tpu_custom_call.1} parent=5 // pred_fallthru
        _
      %p271 = scmp.le.s32.totalorder 1, %s15
      %p272 = scmp.lt.s32.totalorder %s15, 3
      %p273 = pnand %p271, %p272
      %p274 = pneg %p273
      // Predicated region
      $region41: #{tpu_custom_call.1} parent=5 // pred_check
        _
      $region42: #{tpu_custom_call.1} parent=5 // pred_check_branch
        %276 = sbr.rel (%p273) target = $region44
      $region43: #{tpu_custom_call.1} parent=5 // pred_region
        %s277 = ssub.s32 %s15, 1
        // Predicated region
        $region45: #{tpu_custom_call.1} parent=43 // pred_check
          %p278 = pneg %p160
        $region46: #{tpu_custom_call.1} parent=43 // pred_check_branch
          %280 = sbr.rel (%p278) target = $region48
        $region47: #{tpu_custom_call.1} parent=43 // pred_region
          %282 = dma.done [#allocation3], 8192
        $region48: #{tpu_custom_call.1} parent=43 // pred_fallthru
          _
        %p283 = scmp.lt.s32.totalorder %s24, 1
        %s284 = scalar_select %p283, %s24, 1
        %p285 = scmp.lt.s32.totalorder %s25, 0
        %s286 = scalar_select %p285, %s25, 0
        %s287 = sadd.s32 %s286, %s284
        %s288 = smul.addr %s287, 4
        %s289 = scalar_lea.vmem %s0, %s288
        %p290 = pneg %p55
        %p291 = pneg %p52
        %p292 = pneg %p76
        %p293 = pneg %p73
        %p294 = pneg %p97
        %p295 = pneg %p94
        %p296 = pneg %p118
        %p297 = pneg %p115
        %p298 = pneg %p139
        %p299 = pneg %p136
        %p300 = pneg %p160
        %p301 = pneg %p157
        %p302 = pneg %p188
        %p303 = pneg %p185
        %p304 = scmp.lt.s32.totalorder %s24, 1
        %s305 = scalar_select %p304, %s24, 1
        %p306 = scmp.lt.s32.totalorder %s25, 0
        %s307 = scalar_select %p306, %s25, 0
        %s308 = smul.addr %s305, 32
        %s309 = sadd.s32 %s307, %s308
        %s310 = smul.addr %s309, 8
        %s311 = scalar_lea.vmem %s6, %s310
        %p312 = pneg %p216
        %p313 = pneg %p213
        %p314 = scmp.lt.s32.totalorder %s24, 1
        %s315 = scalar_select %p314, %s24, 1
        %p316 = scmp.lt.s32.totalorder %s25, 0
        %s317 = scalar_select %p316, %s25, 0
        %s318 = smul.addr %s317, 64
        %s319 = smul.addr %s315, 64
        %s320 = sadd.s32 %s318, %s319
        %s321 = smul.addr %s320, 8
        %s322 = scalar_lea.vmem %s7, %s321
        %p323 = scmp.lt.s32.totalorder %s24, 1
        %s324 = scalar_select %p323, %s24, 1
        %p325 = scmp.lt.s32.totalorder %s25, 0
        %s326 = scalar_select %p325, %s25, 0
        %s327 = sadd.s32 %s326, %s324
        %s328 = smul.addr %s327, 4
        %s329 = scalar_lea.vmem %s0, %s328
        %p330 = scmp.lt.s32.totalorder %s24, 1
        %s331 = scalar_select %p330, %s24, 1
        %p332 = scmp.lt.s32.totalorder %s25, 0
        %s333 = scalar_select %p332, %s25, 0
        %s334 = smul.addr %s331, 32
        %s335 = sadd.s32 %s333, %s334
        %s336 = smul.addr %s335, 8
        %s337 = scalar_lea.vmem %s6, %s336
        %p338 = scmp.lt.s32.totalorder %s24, 1
        %s339 = scalar_select %p338, %s24, 1
        %p340 = scmp.lt.s32.totalorder %s25, 0
        %s341 = scalar_select %p340, %s25, 0
        %s342 = smul.addr %s341, 64
        %s343 = smul.addr %s339, 64
        %s344 = sadd.s32 %s342, %s343
        %s345 = smul.addr %s344, 8
        %s346 = scalar_lea.vmem %s7, %s345
        %v347 = vld [vmem:[%s329] sm:$0x7]
        %v348 = vld [vmem:[%s1] sm:$0xff]
        %v349 = vld [vmem:[%s1 + $0x8] sm:$0xff]
        %v350 = vld [vmem:[%s1 + $0x10] sm:$0xff]
        %v351 = vld [vmem:[%s1 + $0x18] sm:$0xff]
        %v352 = vld [vmem:[%s1 + $0x20] sm:$0xff]
        %v353 = vld [vmem:[%s1 + $0x28] sm:$0xff]
        %v354 = vld [vmem:[%s1 + $0x30] sm:$0xff]
        %v355 = vld [vmem:[%s1 + $0x38] sm:$0xff]
        %v356 = vld [vmem:[%s1 + $0x40] sm:$0xff]
        %v357 = vld [vmem:[%s1 + $0x48] sm:$0xff]
        %v358 = vld [vmem:[%s1 + $0x50] sm:$0xff]
        %v359 = vld [vmem:[%s1 + $0x58] sm:$0xff]
        %v360 = vld [vmem:[%s1 + $0x60] sm:$0xff]
        %v361 = vld [vmem:[%s1 + $0x68] sm:$0xff]
        %v362 = vld [vmem:[%s1 + $0x70] sm:$0xff]
        %v363 = vld [vmem:[%s1 + $0x78] sm:$0xff]
        %365 = vset.pattern.permute.xlu0 0
        %366 = vperm.xlu0 %365, %v348
        %v367 = vpop.permute.xlu0 %366
        %370 = vset.pattern.permute.xlu0 0
        %371 = vperm.xlu0 %370, %v349
        %v372 = vpop.permute.xlu0 %371
        %375 = vset.pattern.permute.xlu0 0
        %376 = vperm.xlu0 %375, %v350
        %v377 = vpop.permute.xlu0 %376
        %380 = vset.pattern.permute.xlu0 0
        %381 = vperm.xlu0 %380, %v351
        %v382 = vpop.permute.xlu0 %381
        %385 = vset.pattern.permute.xlu0 0
        %386 = vperm.xlu0 %385, %v352
        %v387 = vpop.permute.xlu0 %386
        %390 = vset.pattern.permute.xlu0 0
        %391 = vperm.xlu0 %390, %v353
        %v392 = vpop.permute.xlu0 %391
        %395 = vset.pattern.permute.xlu0 0
        %396 = vperm.xlu0 %395, %v354
        %v397 = vpop.permute.xlu0 %396
        %400 = vset.pattern.permute.xlu0 0
        %401 = vperm.xlu0 %400, %v355
        %v402 = vpop.permute.xlu0 %401
        %405 = vset.pattern.permute.xlu0 0
        %406 = vperm.xlu0 %405, %v356
        %v407 = vpop.permute.xlu0 %406
        %410 = vset.pattern.permute.xlu0 0
        %411 = vperm.xlu0 %410, %v357
        %v412 = vpop.permute.xlu0 %411
        %415 = vset.pattern.permute.xlu0 0
        %416 = vperm.xlu0 %415, %v358
        %v417 = vpop.permute.xlu0 %416
        %420 = vset.pattern.permute.xlu0 0
        %421 = vperm.xlu0 %420, %v359
        %v422 = vpop.permute.xlu0 %421
        %425 = vset.pattern.permute.xlu0 0
        %426 = vperm.xlu0 %425, %v360
        %v427 = vpop.permute.xlu0 %426
        %430 = vset.pattern.permute.xlu0 0
        %431 = vperm.xlu0 %430, %v361
        %v432 = vpop.permute.xlu0 %431
        %435 = vset.pattern.permute.xlu0 0
        %436 = vperm.xlu0 %435, %v362
        %v437 = vpop.permute.xlu0 %436
        %440 = vset.pattern.permute.xlu0 0
        %441 = vperm.xlu0 %440, %v363
        %v442 = vpop.permute.xlu0 %441
        %v444 = vperm.slane %v347, 0
        %v445 = vmul.f32 %v367, %v444
        %v446 = vmul.f32 %v372, %v444
        %v447 = vmul.f32 %v377, %v444
        %v448 = vmul.f32 %v382, %v444
        %v449 = vmul.f32 %v387, %v444
        %v450 = vmul.f32 %v392, %v444
        %v451 = vmul.f32 %v397, %v444
        %v452 = vmul.f32 %v402, %v444
        %v453 = vmul.f32 %v407, %v444
        %v454 = vmul.f32 %v412, %v444
        %v455 = vmul.f32 %v417, %v444
        %v456 = vmul.f32 %v422, %v444
        %v457 = vmul.f32 %v427, %v444
        %v458 = vmul.f32 %v432, %v444
        %v459 = vmul.f32 %v437, %v444
        %v460 = vmul.f32 %v442, %v444
        %461 = vset.pattern.permute.xlu0 1
        %462 = vperm.xlu0 %461, %v348
        %v463 = vpop.permute.xlu0 %462
        %465 = vset.pattern.permute.xlu0 1
        %466 = vperm.xlu0 %465, %v349
        %v467 = vpop.permute.xlu0 %466
        %469 = vset.pattern.permute.xlu0 1
        %470 = vperm.xlu0 %469, %v350
        %v471 = vpop.permute.xlu0 %470
        %473 = vset.pattern.permute.xlu0 1
        %474 = vperm.xlu0 %473, %v351
        %v475 = vpop.permute.xlu0 %474
        %477 = vset.pattern.permute.xlu0 1
        %478 = vperm.xlu0 %477, %v352
        %v479 = vpop.permute.xlu0 %478
        %481 = vset.pattern.permute.xlu0 1
        %482 = vperm.xlu0 %481, %v353
        %v483 = vpop.permute.xlu0 %482
        %485 = vset.pattern.permute.xlu0 1
        %486 = vperm.xlu0 %485, %v354
        %v487 = vpop.permute.xlu0 %486
        %489 = vset.pattern.permute.xlu0 1
        %490 = vperm.xlu0 %489, %v355
        %v491 = vpop.permute.xlu0 %490
        %493 = vset.pattern.permute.xlu0 1
        %494 = vperm.xlu0 %493, %v356
        %v495 = vpop.permute.xlu0 %494
        %497 = vset.pattern.permute.xlu0 1
        %498 = vperm.xlu0 %497, %v357
        %v499 = vpop.permute.xlu0 %498
        %501 = vset.pattern.permute.xlu0 1
        %502 = vperm.xlu0 %501, %v358
        %v503 = vpop.permute.xlu0 %502
        %505 = vset.pattern.permute.xlu0 1
        %506 = vperm.xlu0 %505, %v359
        %v507 = vpop.permute.xlu0 %506
        %509 = vset.pattern.permute.xlu0 1
        %510 = vperm.xlu0 %509, %v360
        %v511 = vpop.permute.xlu0 %510
        %513 = vset.pattern.permute.xlu0 1
        %514 = vperm.xlu0 %513, %v361
        %v515 = vpop.permute.xlu0 %514
        %517 = vset.pattern.permute.xlu0 1
        %518 = vperm.xlu0 %517, %v362
        %v519 = vpop.permute.xlu0 %518
        %521 = vset.pattern.permute.xlu0 1
        %522 = vperm.xlu0 %521, %v363
        %v523 = vpop.permute.xlu0 %522
        %v525 = vperm.slane %v347, 1
        %v526 = vmul.f32 %v463, %v525
        %v527 = vmul.f32 %v467, %v525
        %v528 = vmul.f32 %v471, %v525
        %v529 = vmul.f32 %v475, %v525
        %v530 = vmul.f32 %v479, %v525
        %v531 = vmul.f32 %v483, %v525
        %v532 = vmul.f32 %v487, %v525
        %v533 = vmul.f32 %v491, %v525
        %v534 = vmul.f32 %v495, %v525
        %v535 = vmul.f32 %v499, %v525
        %v536 = vmul.f32 %v503, %v525
        %v537 = vmul.f32 %v507, %v525
        %v538 = vmul.f32 %v511, %v525
        %v539 = vmul.f32 %v515, %v525
        %v540 = vmul.f32 %v519, %v525
        %v541 = vmul.f32 %v523, %v525
        %v542 = vadd.f32 %v445, %v526
        %v543 = vadd.f32 %v446, %v527
        %v544 = vadd.f32 %v447, %v528
        %v545 = vadd.f32 %v448, %v529
        %v546 = vadd.f32 %v449, %v530
        %v547 = vadd.f32 %v450, %v531
        %v548 = vadd.f32 %v451, %v532
        %v549 = vadd.f32 %v452, %v533
        %v550 = vadd.f32 %v453, %v534
        %v551 = vadd.f32 %v454, %v535
        %v552 = vadd.f32 %v455, %v536
        %v553 = vadd.f32 %v456, %v537
        %v554 = vadd.f32 %v457, %v538
        %v555 = vadd.f32 %v458, %v539
        %v556 = vadd.f32 %v459, %v540
        %v557 = vadd.f32 %v460, %v541
        %558 = vset.pattern.permute.xlu0 2
        %559 = vperm.xlu0 %558, %v348
        %v560 = vpop.permute.xlu0 %559
        %562 = vset.pattern.permute.xlu0 2
        %563 = vperm.xlu0 %562, %v349
        %v564 = vpop.permute.xlu0 %563
        %566 = vset.pattern.permute.xlu0 2
        %567 = vperm.xlu0 %566, %v350
        %v568 = vpop.permute.xlu0 %567
        %570 = vset.pattern.permute.xlu0 2
        %571 = vperm.xlu0 %570, %v351
        %v572 = vpop.permute.xlu0 %571
        %574 = vset.pattern.permute.xlu0 2
        %575 = vperm.xlu0 %574, %v352
        %v576 = vpop.permute.xlu0 %575
        %578 = vset.pattern.permute.xlu0 2
        %579 = vperm.xlu0 %578, %v353
        %v580 = vpop.permute.xlu0 %579
        %582 = vset.pattern.permute.xlu0 2
        %583 = vperm.xlu0 %582, %v354
        %v584 = vpop.permute.xlu0 %583
        %586 = vset.pattern.permute.xlu0 2
        %587 = vperm.xlu0 %586, %v355
        %v588 = vpop.permute.xlu0 %587
        %590 = vset.pattern.permute.xlu0 2
        %591 = vperm.xlu0 %590, %v356
        %v592 = vpop.permute.xlu0 %591
        %594 = vset.pattern.permute.xlu0 2
        %595 = vperm.xlu0 %594, %v357
        %v596 = vpop.permute.xlu0 %595
        %598 = vset.pattern.permute.xlu0 2
        %599 = vperm.xlu0 %598, %v358
        %v600 = vpop.permute.xlu0 %599
        %602 = vset.pattern.permute.xlu0 2
        %603 = vperm.xlu0 %602, %v359
        %v604 = vpop.permute.xlu0 %603
        %606 = vset.pattern.permute.xlu0 2
        %607 = vperm.xlu0 %606, %v360
        %v608 = vpop.permute.xlu0 %607
        %610 = vset.pattern.permute.xlu0 2
        %611 = vperm.xlu0 %610, %v361
        %v612 = vpop.permute.xlu0 %611
        %614 = vset.pattern.permute.xlu0 2
        %615 = vperm.xlu0 %614, %v362
        %v616 = vpop.permute.xlu0 %615
        %618 = vset.pattern.permute.xlu0 2
        %619 = vperm.xlu0 %618, %v363
        %v620 = vpop.permute.xlu0 %619
        %v622 = vperm.slane %v347, 2
        %v623 = vmul.f32 %v560, %v622
        %v624 = vmul.f32 %v564, %v622
        %v625 = vmul.f32 %v568, %v622
        %v626 = vmul.f32 %v572, %v622
        %v627 = vmul.f32 %v576, %v622
        %v628 = vmul.f32 %v580, %v622
        %v629 = vmul.f32 %v584, %v622
        %v630 = vmul.f32 %v588, %v622
        %v631 = vmul.f32 %v592, %v622
        %v632 = vmul.f32 %v596, %v622
        %v633 = vmul.f32 %v600, %v622
        %v634 = vmul.f32 %v604, %v622
        %v635 = vmul.f32 %v608, %v622
        %v636 = vmul.f32 %v612, %v622
        %v637 = vmul.f32 %v616, %v622
        %v638 = vmul.f32 %v620, %v622
        %v639 = vadd.f32 %v542, %v623
        %v640 = vadd.f32 %v543, %v624
        %v641 = vadd.f32 %v544, %v625
        %v642 = vadd.f32 %v545, %v626
        %v643 = vadd.f32 %v546, %v627
        %v644 = vadd.f32 %v547, %v628
        %v645 = vadd.f32 %v548, %v629
        %v646 = vadd.f32 %v549, %v630
        %v647 = vadd.f32 %v550, %v631
        %v648 = vadd.f32 %v551, %v632
        %v649 = vadd.f32 %v552, %v633
        %v650 = vadd.f32 %v553, %v634
        %v651 = vadd.f32 %v554, %v635
        %v652 = vadd.f32 %v555, %v636
        %v653 = vadd.f32 %v556, %v637
        %v654 = vadd.f32 %v557, %v638
        %v655 = vld [vmem:[%s2] sm:$0xff]
        %v656 = vld [vmem:[%s2 + $0x8] sm:$0xff]
        %v657 = vld [vmem:[%s2 + $0x10] sm:$0xff]
        %v658 = vld [vmem:[%s2 + $0x18] sm:$0xff]
        %v659 = vld [vmem:[%s2 + $0x20] sm:$0xff]
        %v660 = vld [vmem:[%s2 + $0x28] sm:$0xff]
        %v661 = vld [vmem:[%s2 + $0x30] sm:$0xff]
        %v662 = vld [vmem:[%s2 + $0x38] sm:$0xff]
        %v663 = vld [vmem:[%s2 + $0x40] sm:$0xff]
        %v664 = vld [vmem:[%s2 + $0x48] sm:$0xff]
        %v665 = vld [vmem:[%s2 + $0x50] sm:$0xff]
        %v666 = vld [vmem:[%s2 + $0x58] sm:$0xff]
        %v667 = vld [vmem:[%s2 + $0x60] sm:$0xff]
        %v668 = vld [vmem:[%s2 + $0x68] sm:$0xff]
        %v669 = vld [vmem:[%s2 + $0x70] sm:$0xff]
        %v670 = vld [vmem:[%s2 + $0x78] sm:$0xff]
        %672 = vset.pattern.permute.xlu0 0
        %673 = vperm.xlu0 %672, %v655
        %v674 = vpop.permute.xlu0 %673
        %677 = vset.pattern.permute.xlu0 0
        %678 = vperm.xlu0 %677, %v656
        %v679 = vpop.permute.xlu0 %678
        %682 = vset.pattern.permute.xlu0 0
        %683 = vperm.xlu0 %682, %v657
        %v684 = vpop.permute.xlu0 %683
        %687 = vset.pattern.permute.xlu0 0
        %688 = vperm.xlu0 %687, %v658
        %v689 = vpop.permute.xlu0 %688
        %692 = vset.pattern.permute.xlu0 0
        %693 = vperm.xlu0 %692, %v659
        %v694 = vpop.permute.xlu0 %693
        %697 = vset.pattern.permute.xlu0 0
        %698 = vperm.xlu0 %697, %v660
        %v699 = vpop.permute.xlu0 %698
        %702 = vset.pattern.permute.xlu0 0
        %703 = vperm.xlu0 %702, %v661
        %v704 = vpop.permute.xlu0 %703
        %707 = vset.pattern.permute.xlu0 0
        %708 = vperm.xlu0 %707, %v662
        %v709 = vpop.permute.xlu0 %708
        %712 = vset.pattern.permute.xlu0 0
        %713 = vperm.xlu0 %712, %v663
        %v714 = vpop.permute.xlu0 %713
        %717 = vset.pattern.permute.xlu0 0
        %718 = vperm.xlu0 %717, %v664
        %v719 = vpop.permute.xlu0 %718
        %722 = vset.pattern.permute.xlu0 0
        %723 = vperm.xlu0 %722, %v665
        %v724 = vpop.permute.xlu0 %723
        %727 = vset.pattern.permute.xlu0 0
        %728 = vperm.xlu0 %727, %v666
        %v729 = vpop.permute.xlu0 %728
        %732 = vset.pattern.permute.xlu0 0
        %733 = vperm.xlu0 %732, %v667
        %v734 = vpop.permute.xlu0 %733
        %737 = vset.pattern.permute.xlu0 0
        %738 = vperm.xlu0 %737, %v668
        %v739 = vpop.permute.xlu0 %738
        %742 = vset.pattern.permute.xlu0 0
        %743 = vperm.xlu0 %742, %v669
        %v744 = vpop.permute.xlu0 %743
        %747 = vset.pattern.permute.xlu0 0
        %748 = vperm.xlu0 %747, %v670
        %v749 = vpop.permute.xlu0 %748
        %v751 = vadd.f32 %v639, %v674
        %v752 = vadd.f32 %v640, %v679
        %v753 = vadd.f32 %v641, %v684
        %v754 = vadd.f32 %v642, %v689
        %v755 = vadd.f32 %v643, %v694
        %v756 = vadd.f32 %v644, %v699
        %v757 = vadd.f32 %v645, %v704
        %v758 = vadd.f32 %v646, %v709
        %v759 = vadd.f32 %v647, %v714
        %v760 = vadd.f32 %v648, %v719
        %v761 = vadd.f32 %v649, %v724
        %v762 = vadd.f32 %v650, %v729
        %v763 = vadd.f32 %v651, %v734
        %v764 = vadd.f32 %v652, %v739
        %v765 = vadd.f32 %v653, %v744
        %v766 = vadd.f32 %v654, %v749
        %v767 = vmax.f32 %v751, 0.0
        %v768 = vmax.f32 %v752, 0.0
        %v769 = vmax.f32 %v753, 0.0
        %v770 = vmax.f32 %v754, 0.0
        %v771 = vmax.f32 %v755, 0.0
        %v772 = vmax.f32 %v756, 0.0
        %v773 = vmax.f32 %v757, 0.0
        %v774 = vmax.f32 %v758, 0.0
        %v775 = vmax.f32 %v759, 0.0
        %v776 = vmax.f32 %v760, 0.0
        %v777 = vmax.f32 %v761, 0.0
        %v778 = vmax.f32 %v762, 0.0
        %v779 = vmax.f32 %v763, 0.0
        %v780 = vmax.f32 %v764, 0.0
        %v781 = vmax.f32 %v765, 0.0
        %v782 = vmax.f32 %v766, 0.0
        %v783 = vpack.c.bf16 %v768, %v767
        %v784 = vpack.c.bf16 %v770, %v769
        %v785 = vpack.c.bf16 %v772, %v771
        %v786 = vpack.c.bf16 %v774, %v773
        %v787 = vpack.c.bf16 %v776, %v775
        %v788 = vpack.c.bf16 %v778, %v777
        %v789 = vpack.c.bf16 %v780, %v779
        %v790 = vpack.c.bf16 %v782, %v781
        %v791 = vld [vmem:[%s3] sm:$0xf]
        %v792 = vld [vmem:[%s3 + $0x4] sm:$0xf]
        %v793 = vld [vmem:[%s3 + $0x8] sm:$0xf]
        %v794 = vld [vmem:[%s3 + $0xc] sm:$0xf]
        %v795 = vld [vmem:[%s3 + $0x10] sm:$0xf]
        %v796 = vld [vmem:[%s3 + $0x14] sm:$0xf]
        %v797 = vld [vmem:[%s3 + $0x18] sm:$0xf]
        %v798 = vld [vmem:[%s3 + $0x1c] sm:$0xf]
        %v799 = vld [vmem:[%s3 + $0x20] sm:$0xf]
        %v800 = vld [vmem:[%s3 + $0x24] sm:$0xf]
        %v801 = vld [vmem:[%s3 + $0x28] sm:$0xf]
        %v802 = vld [vmem:[%s3 + $0x2c] sm:$0xf]
        %v803 = vld [vmem:[%s3 + $0x30] sm:$0xf]
        %v804 = vld [vmem:[%s3 + $0x34] sm:$0xf]
        %v805 = vld [vmem:[%s3 + $0x38] sm:$0xf]
        %v806 = vld [vmem:[%s3 + $0x3c] sm:$0xf]
        %v807 = vld [vmem:[%s3 + $0x40] sm:$0xf]
        %v808 = vld [vmem:[%s3 + $0x44] sm:$0xf]
        %v809 = vld [vmem:[%s3 + $0x48] sm:$0xf]
        %v810 = vld [vmem:[%s3 + $0x4c] sm:$0xf]
        %v811 = vld [vmem:[%s3 + $0x50] sm:$0xf]
        %v812 = vld [vmem:[%s3 + $0x54] sm:$0xf]
        %v813 = vld [vmem:[%s3 + $0x58] sm:$0xf]
        %v814 = vld [vmem:[%s3 + $0x5c] sm:$0xf]
        %v815 = vld [vmem:[%s3 + $0x60] sm:$0xf]
        %v816 = vld [vmem:[%s3 + $0x64] sm:$0xf]
        %v817 = vld [vmem:[%s3 + $0x68] sm:$0xf]
        %v818 = vld [vmem:[%s3 + $0x6c] sm:$0xf]
        %v819 = vld [vmem:[%s3 + $0x70] sm:$0xf]
        %v820 = vld [vmem:[%s3 + $0x74] sm:$0xf]
        %v821 = vld [vmem:[%s3 + $0x78] sm:$0xf]
        %v822 = vld [vmem:[%s3 + $0x7c] sm:$0xf]
        %v823 = vld [vmem:[%s4] sm:$0xff]
        %v824 = vld [vmem:[%s4 + $0x8] sm:$0xff]
        %v825 = vld [vmem:[%s4 + $0x10] sm:$0xff]
        %v826 = vld [vmem:[%s4 + $0x18] sm:$0xff]
        %v827 = vld [vmem:[%s4 + $0x20] sm:$0xff]
        %v828 = vld [vmem:[%s4 + $0x28] sm:$0xff]
        %v829 = vld [vmem:[%s4 + $0x30] sm:$0xff]
        %v830 = vld [vmem:[%s4 + $0x38] sm:$0xff]
        %v831 = vld [vmem:[%s4 + $0x40] sm:$0xff]
        %v832 = vld [vmem:[%s4 + $0x48] sm:$0xff]
        %v833 = vld [vmem:[%s4 + $0x50] sm:$0xff]
        %v834 = vld [vmem:[%s4 + $0x58] sm:$0xff]
        %v835 = vld [vmem:[%s4 + $0x60] sm:$0xff]
        %v836 = vld [vmem:[%s4 + $0x68] sm:$0xff]
        %v837 = vld [vmem:[%s4 + $0x70] sm:$0xff]
        %v838 = vld [vmem:[%s4 + $0x78] sm:$0xff]
        %v839 = vld [vmem:[%s4 + $0x80] sm:$0xff]
        %v840 = vld [vmem:[%s4 + $0x88] sm:$0xff]
        %v841 = vld [vmem:[%s4 + $0x90] sm:$0xff]
        %v842 = vld [vmem:[%s4 + $0x98] sm:$0xff]
        %v843 = vld [vmem:[%s4 + $0xa0] sm:$0xff]
        %v844 = vld [vmem:[%s4 + $0xa8] sm:$0xff]
        %v845 = vld [vmem:[%s4 + $0xb0] sm:$0xff]
        %v846 = vld [vmem:[%s4 + $0xb8] sm:$0xff]
        %v847 = vld [vmem:[%s4 + $0xc0] sm:$0xff]
        %v848 = vld [vmem:[%s4 + $0xc8] sm:$0xff]
        %v849 = vld [vmem:[%s4 + $0xd0] sm:$0xff]
        %v850 = vld [vmem:[%s4 + $0xd8] sm:$0xff]
        %v851 = vld [vmem:[%s4 + $0xe0] sm:$0xff]
        %v852 = vld [vmem:[%s4 + $0xe8] sm:$0xff]
        %v853 = vld [vmem:[%s4 + $0xf0] sm:$0xff]
        %v854 = vld [vmem:[%s4 + $0xf8] sm:$0xff]
        %856 = vset.pattern.permute.xlu0 0
        %857 = vperm.xlu0 %856, %v823
        %v858 = vpop.permute.xlu0 %857
        %861 = vset.pattern.permute.xlu0 0
        %862 = vperm.xlu0 %861, %v824
        %v863 = vpop.permute.xlu0 %862
        %866 = vset.pattern.permute.xlu0 0
        %867 = vperm.xlu0 %866, %v825
        %v868 = vpop.permute.xlu0 %867
        %871 = vset.pattern.permute.xlu0 0
        %872 = vperm.xlu0 %871, %v826
        %v873 = vpop.permute.xlu0 %872
        %876 = vset.pattern.permute.xlu0 0
        %877 = vperm.xlu0 %876, %v827
        %v878 = vpop.permute.xlu0 %877
        %881 = vset.pattern.permute.xlu0 0
        %882 = vperm.xlu0 %881, %v828
        %v883 = vpop.permute.xlu0 %882
        %886 = vset.pattern.permute.xlu0 0
        %887 = vperm.xlu0 %886, %v829
        %v888 = vpop.permute.xlu0 %887
        %891 = vset.pattern.permute.xlu0 0
        %892 = vperm.xlu0 %891, %v830
        %v893 = vpop.permute.xlu0 %892
        %896 = vset.pattern.permute.xlu0 0
        %897 = vperm.xlu0 %896, %v831
        %v898 = vpop.permute.xlu0 %897
        %901 = vset.pattern.permute.xlu0 0
        %902 = vperm.xlu0 %901, %v832
        %v903 = vpop.permute.xlu0 %902
        %906 = vset.pattern.permute.xlu0 0
        %907 = vperm.xlu0 %906, %v833
        %v908 = vpop.permute.xlu0 %907
        %911 = vset.pattern.permute.xlu0 0
        %912 = vperm.xlu0 %911, %v834
        %v913 = vpop.permute.xlu0 %912
        %916 = vset.pattern.permute.xlu0 0
        %917 = vperm.xlu0 %916, %v835
        %v918 = vpop.permute.xlu0 %917
        %921 = vset.pattern.permute.xlu0 0
        %922 = vperm.xlu0 %921, %v836
        %v923 = vpop.permute.xlu0 %922
        %926 = vset.pattern.permute.xlu0 0
        %927 = vperm.xlu0 %926, %v837
        %v928 = vpop.permute.xlu0 %927
        %931 = vset.pattern.permute.xlu0 0
        %932 = vperm.xlu0 %931, %v838
        %v933 = vpop.permute.xlu0 %932
        %936 = vset.pattern.permute.xlu0 0
        %937 = vperm.xlu0 %936, %v839
        %v938 = vpop.permute.xlu0 %937
        %941 = vset.pattern.permute.xlu0 0
        %942 = vperm.xlu0 %941, %v840
        %v943 = vpop.permute.xlu0 %942
        %946 = vset.pattern.permute.xlu0 0
        %947 = vperm.xlu0 %946, %v841
        %v948 = vpop.permute.xlu0 %947
        %951 = vset.pattern.permute.xlu0 0
        %952 = vperm.xlu0 %951, %v842
        %v953 = vpop.permute.xlu0 %952
        %956 = vset.pattern.permute.xlu0 0
        %957 = vperm.xlu0 %956, %v843
        %v958 = vpop.permute.xlu0 %957
        %961 = vset.pattern.permute.xlu0 0
        %962 = vperm.xlu0 %961, %v844
        %v963 = vpop.permute.xlu0 %962
        %966 = vset.pattern.permute.xlu0 0
        %967 = vperm.xlu0 %966, %v845
        %v968 = vpop.permute.xlu0 %967
        %971 = vset.pattern.permute.xlu0 0
        %972 = vperm.xlu0 %971, %v846
        %v973 = vpop.permute.xlu0 %972
        %976 = vset.pattern.permute.xlu0 0
        %977 = vperm.xlu0 %976, %v847
        %v978 = vpop.permute.xlu0 %977
        %981 = vset.pattern.permute.xlu0 0
        %982 = vperm.xlu0 %981, %v848
        %v983 = vpop.permute.xlu0 %982
        %986 = vset.pattern.permute.xlu0 0
        %987 = vperm.xlu0 %986, %v849
        %v988 = vpop.permute.xlu0 %987
        %991 = vset.pattern.permute.xlu0 0
        %992 = vperm.xlu0 %991, %v850
        %v993 = vpop.permute.xlu0 %992
        %996 = vset.pattern.permute.xlu0 0
        %997 = vperm.xlu0 %996, %v851
        %v998 = vpop.permute.xlu0 %997
        %1001 = vset.pattern.permute.xlu0 0
        %1002 = vperm.xlu0 %1001, %v852
        %v1003 = vpop.permute.xlu0 %1002
        %1006 = vset.pattern.permute.xlu0 0
        %1007 = vperm.xlu0 %1006, %v853
        %v1008 = vpop.permute.xlu0 %1007
        %1011 = vset.pattern.permute.xlu0 0
        %1012 = vperm.xlu0 %1011, %v854
        %v1013 = vpop.permute.xlu0 %1012
        %v1047 = vunpack.c.l.b16 %v791
        %v1048 = vunpack.c.l.b16 %v792
        %v1049 = vunpack.c.l.b16 %v793
        %v1050 = vunpack.c.l.b16 %v794
        %v1051 = vunpack.c.l.b16 %v795
        %v1052 = vunpack.c.l.b16 %v796
        %v1053 = vunpack.c.l.b16 %v797
        %v1054 = vunpack.c.l.b16 %v798
        %v1055 = vunpack.c.l.b16 %v799
        %v1056 = vunpack.c.l.b16 %v800
        %v1057 = vunpack.c.l.b16 %v801
        %v1058 = vunpack.c.l.b16 %v802
        %v1059 = vunpack.c.l.b16 %v803
        %v1060 = vunpack.c.l.b16 %v804
        %v1061 = vunpack.c.l.b16 %v805
        %v1062 = vunpack.c.l.b16 %v806
        %v1063 = vunpack.c.l.b16 %v807
        %v1064 = vunpack.c.l.b16 %v808
        %v1065 = vunpack.c.l.b16 %v809
        %v1066 = vunpack.c.l.b16 %v810
        %v1067 = vunpack.c.l.b16 %v811
        %v1068 = vunpack.c.l.b16 %v812
        %v1069 = vunpack.c.l.b16 %v813
        %v1070 = vunpack.c.l.b16 %v814
        %v1071 = vunpack.c.l.b16 %v815
        %v1072 = vunpack.c.l.b16 %v816
        %v1073 = vunpack.c.l.b16 %v817
        %v1074 = vunpack.c.l.b16 %v818
        %v1075 = vunpack.c.l.b16 %v819
        %v1076 = vunpack.c.l.b16 %v820
        %v1077 = vunpack.c.l.b16 %v821
        %v1078 = vunpack.c.l.b16 %v822
        %v1079 = vpack.c.b16 %v1048, %v1047
        %v1080 = vpack.c.b16 %v1050, %v1049
        %v1081 = vpack.c.b16 %v1052, %v1051
        %v1082 = vpack.c.b16 %v1054, %v1053
        %v1083 = vpack.c.b16 %v1056, %v1055
        %v1084 = vpack.c.b16 %v1058, %v1057
        %v1085 = vpack.c.b16 %v1060, %v1059
        %v1086 = vpack.c.b16 %v1062, %v1061
        %v1087 = vpack.c.b16 %v1064, %v1063
        %v1088 = vpack.c.b16 %v1066, %v1065
        %v1089 = vpack.c.b16 %v1068, %v1067
        %v1090 = vpack.c.b16 %v1070, %v1069
        %v1091 = vpack.c.b16 %v1072, %v1071
        %v1092 = vpack.c.b16 %v1074, %v1073
        %v1093 = vpack.c.b16 %v1076, %v1075
        %v1094 = vpack.c.b16 %v1078, %v1077
        %1111 = vmatpush.bf16.msra.mxu0 %v790
        %1112 = vmatpush.bf16.msra.mxu0 %v789
        %1113 = vmatpush.bf16.msra.mxu0 %v788
        %1114 = vmatpush.bf16.msra.mxu0 %v787
        %1115 = vmatpush.bf16.msra.mxu0 %v786
        %1116 = vmatpush.bf16.msra.mxu0 %v785
        %1117 = vmatpush.bf16.msra.mxu0 %v784
        %1118 = vmatpush.bf16.msra.mxu0 %v783
        %1119 = vmatmul.bf16.gmra.mxu0 %v1079
        %v1120 = vpop.f32.mrf.mxu0
        %v1121 = vadd.f32 %v858, %v1120
        %v1122 = vpop.f32.mrf.mxu0
        %v1123 = vadd.f32 %v863, %v1122
        %1124 = vmatmul.bf16.gmra.mxu0 %v1080
        %v1125 = vpop.f32.mrf.mxu0
        %v1126 = vadd.f32 %v868, %v1125
        %v1127 = vpop.f32.mrf.mxu0
        %v1128 = vadd.f32 %v873, %v1127
        %1129 = vmatmul.bf16.gmra.mxu0 %v1081
        %v1130 = vpop.f32.mrf.mxu0
        %v1131 = vadd.f32 %v878, %v1130
        %v1132 = vpop.f32.mrf.mxu0
        %v1133 = vadd.f32 %v883, %v1132
        %1134 = vmatmul.bf16.gmra.mxu0 %v1082
        %v1135 = vpop.f32.mrf.mxu0
        %v1136 = vadd.f32 %v888, %v1135
        %v1137 = vpop.f32.mrf.mxu0
        %v1138 = vadd.f32 %v893, %v1137
        %1139 = vmatmul.bf16.gmra.mxu0 %v1083
        %v1140 = vpop.f32.mrf.mxu0
        %v1141 = vadd.f32 %v898, %v1140
        %v1142 = vpop.f32.mrf.mxu0
        %v1143 = vadd.f32 %v903, %v1142
        %1144 = vmatmul.bf16.gmra.mxu0 %v1084
        %v1145 = vpop.f32.mrf.mxu0
        %v1146 = vadd.f32 %v908, %v1145
        %v1147 = vpop.f32.mrf.mxu0
        %v1148 = vadd.f32 %v913, %v1147
        %1149 = vmatmul.bf16.gmra.mxu0 %v1085
        %v1150 = vpop.f32.mrf.mxu0
        %v1151 = vadd.f32 %v918, %v1150
        %v1152 = vpop.f32.mrf.mxu0
        %v1153 = vadd.f32 %v923, %v1152
        %1154 = vmatmul.bf16.gmra.mxu0 %v1086
        %v1155 = vpop.f32.mrf.mxu0
        %v1156 = vadd.f32 %v928, %v1155
        %v1157 = vpop.f32.mrf.mxu0
        %v1158 = vadd.f32 %v933, %v1157
        %1159 = vmatmul.bf16.gmra.mxu0 %v1087
        %v1160 = vpop.f32.mrf.mxu0
        %v1161 = vadd.f32 %v938, %v1160
        %v1162 = vpop.f32.mrf.mxu0
        %v1163 = vadd.f32 %v943, %v1162
        %1164 = vmatmul.bf16.gmra.mxu0 %v1088
        %v1165 = vpop.f32.mrf.mxu0
        %v1166 = vadd.f32 %v948, %v1165
        %v1167 = vpop.f32.mrf.mxu0
        %v1168 = vadd.f32 %v953, %v1167
        %1169 = vmatmul.bf16.gmra.mxu0 %v1089
        %v1170 = vpop.f32.mrf.mxu0
        %v1171 = vadd.f32 %v958, %v1170
        %v1172 = vpop.f32.mrf.mxu0
        %v1173 = vadd.f32 %v963, %v1172
        %1174 = vmatmul.bf16.gmra.mxu0 %v1090
        %v1175 = vpop.f32.mrf.mxu0
        %v1176 = vadd.f32 %v968, %v1175
        %v1177 = vpop.f32.mrf.mxu0
        %v1178 = vadd.f32 %v973, %v1177
        %1179 = vmatmul.bf16.gmra.mxu0 %v1091
        %v1180 = vpop.f32.mrf.mxu0
        %v1181 = vadd.f32 %v978, %v1180
        %v1182 = vpop.f32.mrf.mxu0
        %v1183 = vadd.f32 %v983, %v1182
        %1184 = vmatmul.bf16.gmra.mxu0 %v1092
        %v1185 = vpop.f32.mrf.mxu0
        %v1186 = vadd.f32 %v988, %v1185
        %v1187 = vpop.f32.mrf.mxu0
        %v1188 = vadd.f32 %v993, %v1187
        %1189 = vmatmul.bf16.gmra.mxu0 %v1093
        %v1190 = vpop.f32.mrf.mxu0
        %v1191 = vadd.f32 %v998, %v1190
        %v1192 = vpop.f32.mrf.mxu0
        %v1193 = vadd.f32 %v1003, %v1192
        %1194 = vmatmul.bf16.gmra.mxu0 %v1094
        %v1195 = vpop.f32.mrf.mxu0
        %v1196 = vadd.f32 %v1008, %v1195
        %v1197 = vpop.f32.mrf.mxu0
        %v1198 = vadd.f32 %v1013, %v1197
        %1199 = vdwg.mxu0
        %vm1200 = vcmask 261120
        %1201 = vst.msk [vmem:[%s337] sm:$0xff] %vm1200, %v1121
        %1202 = vst.msk [vmem:[%s337 + $0x8] sm:$0xff] %vm1200, %v1123
        %1203 = vst.msk [vmem:[%s337 + $0x10] sm:$0xff] %vm1200, %v1126
        %1204 = vst.msk [vmem:[%s337 + $0x18] sm:$0xff] %vm1200, %v1128
        %1205 = vst.msk [vmem:[%s337 + $0x20] sm:$0xff] %vm1200, %v1131
        %1206 = vst.msk [vmem:[%s337 + $0x28] sm:$0xff] %vm1200, %v1133
        %1207 = vst.msk [vmem:[%s337 + $0x30] sm:$0xff] %vm1200, %v1136
        %1208 = vst.msk [vmem:[%s337 + $0x38] sm:$0xff] %vm1200, %v1138
        %1209 = vst.msk [vmem:[%s337 + $0x40] sm:$0xff] %vm1200, %v1141
        %1210 = vst.msk [vmem:[%s337 + $0x48] sm:$0xff] %vm1200, %v1143
        %1211 = vst.msk [vmem:[%s337 + $0x50] sm:$0xff] %vm1200, %v1146
        %1212 = vst.msk [vmem:[%s337 + $0x58] sm:$0xff] %vm1200, %v1148
        %1213 = vst.msk [vmem:[%s337 + $0x60] sm:$0xff] %vm1200, %v1151
        %1214 = vst.msk [vmem:[%s337 + $0x68] sm:$0xff] %vm1200, %v1153
        %1215 = vst.msk [vmem:[%s337 + $0x70] sm:$0xff] %vm1200, %v1156
        %1216 = vst.msk [vmem:[%s337 + $0x78] sm:$0xff] %vm1200, %v1158
        %1217 = vst.msk [vmem:[%s337 + $0x80] sm:$0xff] %vm1200, %v1161
        %1218 = vst.msk [vmem:[%s337 + $0x88] sm:$0xff] %vm1200, %v1163
        %1219 = vst.msk [vmem:[%s337 + $0x90] sm:$0xff] %vm1200, %v1166
        %1220 = vst.msk [vmem:[%s337 + $0x98] sm:$0xff] %vm1200, %v1168
        %1221 = vst.msk [vmem:[%s337 + $0xa0] sm:$0xff] %vm1200, %v1171
        %1222 = vst.msk [vmem:[%s337 + $0xa8] sm:$0xff] %vm1200, %v1173
        %1223 = vst.msk [vmem:[%s337 + $0xb0] sm:$0xff] %vm1200, %v1176
        %1224 = vst.msk [vmem:[%s337 + $0xb8] sm:$0xff] %vm1200, %v1178
        %1225 = vst.msk [vmem:[%s337 + $0xc0] sm:$0xff] %vm1200, %v1181
        %1226 = vst.msk [vmem:[%s337 + $0xc8] sm:$0xff] %vm1200, %v1183
        %1227 = vst.msk [vmem:[%s337 + $0xd0] sm:$0xff] %vm1200, %v1186
        %1228 = vst.msk [vmem:[%s337 + $0xd8] sm:$0xff] %vm1200, %v1188
        %1229 = vst.msk [vmem:[%s337 + $0xe0] sm:$0xff] %vm1200, %v1191
        %1230 = vst.msk [vmem:[%s337 + $0xe8] sm:$0xff] %vm1200, %v1193
        %1231 = vst.msk [vmem:[%s337 + $0xf0] sm:$0xff] %vm1200, %v1196
        %1232 = vst.msk [vmem:[%s337 + $0xf8] sm:$0xff] %vm1200, %v1198
        %v1233 = vld [vmem:[#allocation2] sm:$0xff]
        %v1234 = vld [vmem:[#allocation2 + $0x8] sm:$0xff]
        %v1235 = vld [vmem:[#allocation2 + $0x10] sm:$0xff]
        %v1236 = vld [vmem:[#allocation2 + $0x18] sm:$0xff]
        %v1237 = vld [vmem:[#allocation2 + $0x20] sm:$0xff]
        %v1238 = vld [vmem:[#allocation2 + $0x28] sm:$0xff]
        %v1239 = vld [vmem:[#allocation2 + $0x30] sm:$0xff]
        %v1240 = vld [vmem:[#allocation2 + $0x38] sm:$0xff]
        %v1241 = vld [vmem:[#allocation2 + $0x40] sm:$0xff]
        %v1242 = vld [vmem:[#allocation2 + $0x48] sm:$0xff]
        %v1243 = vld [vmem:[#allocation2 + $0x50] sm:$0xff]
        %v1244 = vld [vmem:[#allocation2 + $0x58] sm:$0xff]
        %v1245 = vld [vmem:[#allocation2 + $0x60] sm:$0xff]
        %v1246 = vld [vmem:[#allocation2 + $0x68] sm:$0xff]
        %v1247 = vld [vmem:[#allocation2 + $0x70] sm:$0xff]
        %v1248 = vld [vmem:[#allocation2 + $0x78] sm:$0xff]
        %v1249 = vld [vmem:[#allocation2 + $0x80] sm:$0xff]
        %v1250 = vld [vmem:[#allocation2 + $0x88] sm:$0xff]
        %v1251 = vld [vmem:[#allocation2 + $0x90] sm:$0xff]
        %v1252 = vld [vmem:[#allocation2 + $0x98] sm:$0xff]
        %v1253 = vld [vmem:[#allocation2 + $0xa0] sm:$0xff]
        %v1254 = vld [vmem:[#allocation2 + $0xa8] sm:$0xff]
        %v1255 = vld [vmem:[#allocation2 + $0xb0] sm:$0xff]
        %v1256 = vld [vmem:[#allocation2 + $0xb8] sm:$0xff]
        %v1257 = vld [vmem:[#allocation2 + $0xc0] sm:$0xff]
        %v1258 = vld [vmem:[#allocation2 + $0xc8] sm:$0xff]
        %v1259 = vld [vmem:[#allocation2 + $0xd0] sm:$0xff]
        %v1260 = vld [vmem:[#allocation2 + $0xd8] sm:$0xff]
        %v1261 = vld [vmem:[#allocation2 + $0xe0] sm:$0xff]
        %v1262 = vld [vmem:[#allocation2 + $0xe8] sm:$0xff]
        %v1263 = vld [vmem:[#allocation2 + $0xf0] sm:$0xff]
        %v1264 = vld [vmem:[#allocation2 + $0xf8] sm:$0xff]
        %v1265 = vld [vmem:[#allocation2 + $0x100] sm:$0xff]
        %v1266 = vld [vmem:[#allocation2 + $0x108] sm:$0xff]
        %v1267 = vld [vmem:[#allocation2 + $0x110] sm:$0xff]
        %v1268 = vld [vmem:[#allocation2 + $0x118] sm:$0xff]
        %v1269 = vld [vmem:[#allocation2 + $0x120] sm:$0xff]
        %v1270 = vld [vmem:[#allocation2 + $0x128] sm:$0xff]
        %v1271 = vld [vmem:[#allocation2 + $0x130] sm:$0xff]
        %v1272 = vld [vmem:[#allocation2 + $0x138] sm:$0xff]
        %v1273 = vld [vmem:[#allocation2 + $0x140] sm:$0xff]
        %v1274 = vld [vmem:[#allocation2 + $0x148] sm:$0xff]
        %v1275 = vld [vmem:[#allocation2 + $0x150] sm:$0xff]
        %v1276 = vld [vmem:[#allocation2 + $0x158] sm:$0xff]
        %v1277 = vld [vmem:[#allocation2 + $0x160] sm:$0xff]
        %v1278 = vld [vmem:[#allocation2 + $0x168] sm:$0xff]
        %v1279 = vld [vmem:[#allocation2 + $0x170] sm:$0xff]
        %v1280 = vld [vmem:[#allocation2 + $0x178] sm:$0xff]
        %v1281 = vld [vmem:[#allocation2 + $0x180] sm:$0xff]
        %v1282 = vld [vmem:[#allocation2 + $0x188] sm:$0xff]
        %v1283 = vld [vmem:[#allocation2 + $0x190] sm:$0xff]
        %v1284 = vld [vmem:[#allocation2 + $0x198] sm:$0xff]
        %v1285 = vld [vmem:[#allocation2 + $0x1a0] sm:$0xff]
        %v1286 = vld [vmem:[#allocation2 + $0x1a8] sm:$0xff]
        %v1287 = vld [vmem:[#allocation2 + $0x1b0] sm:$0xff]
        %v1288 = vld [vmem:[#allocation2 + $0x1b8] sm:$0xff]
        %v1289 = vld [vmem:[#allocation2 + $0x1c0] sm:$0xff]
        %v1290 = vld [vmem:[#allocation2 + $0x1c8] sm:$0xff]
        %v1291 = vld [vmem:[#allocation2 + $0x1d0] sm:$0xff]
        %v1292 = vld [vmem:[#allocation2 + $0x1d8] sm:$0xff]
        %v1293 = vld [vmem:[#allocation2 + $0x1e0] sm:$0xff]
        %v1294 = vld [vmem:[#allocation2 + $0x1e8] sm:$0xff]
        %v1295 = vld [vmem:[#allocation2 + $0x1f0] sm:$0xff]
        %v1296 = vld [vmem:[#allocation2 + $0x1f8] sm:$0xff]
        %v1297 = vpack.c.bf16 %v1123, %v1121
        %v1298 = vpack.c.bf16 %v1128, %v1126
        %v1299 = vpack.c.bf16 %v1133, %v1131
        %v1300 = vpack.c.bf16 %v1138, %v1136
        %v1301 = vpack.c.bf16 %v1143, %v1141
        %v1302 = vpack.c.bf16 %v1148, %v1146
        %v1303 = vpack.c.bf16 %v1153, %v1151
        %v1304 = vpack.c.bf16 %v1158, %v1156
        %v1305 = vpack.c.bf16 %v1163, %v1161
        %v1306 = vpack.c.bf16 %v1168, %v1166
        %v1307 = vpack.c.bf16 %v1173, %v1171
        %v1308 = vpack.c.bf16 %v1178, %v1176
        %v1309 = vpack.c.bf16 %v1183, %v1181
        %v1310 = vpack.c.bf16 %v1188, %v1186
        %v1311 = vpack.c.bf16 %v1193, %v1191
        %v1312 = vpack.c.bf16 %v1198, %v1196
        %v1377 = vunpack.c.l.b16 %v1233
        %v1378 = vunpack.c.h.b16 %v1233
        %v1379 = vunpack.c.l.b16 %v1234
        %v1380 = vunpack.c.h.b16 %v1234
        %v1381 = vunpack.c.l.b16 %v1235
        %v1382 = vunpack.c.h.b16 %v1235
        %v1383 = vunpack.c.l.b16 %v1236
        %v1384 = vunpack.c.h.b16 %v1236
        %v1385 = vunpack.c.l.b16 %v1237
        %v1386 = vunpack.c.h.b16 %v1237
        %v1387 = vunpack.c.l.b16 %v1238
        %v1388 = vunpack.c.h.b16 %v1238
        %v1389 = vunpack.c.l.b16 %v1239
        %v1390 = vunpack.c.h.b16 %v1239
        %v1391 = vunpack.c.l.b16 %v1240
        %v1392 = vunpack.c.h.b16 %v1240
        %v1393 = vunpack.c.l.b16 %v1241
        %v1394 = vunpack.c.h.b16 %v1241
        %v1395 = vunpack.c.l.b16 %v1242
        %v1396 = vunpack.c.h.b16 %v1242
        %v1397 = vunpack.c.l.b16 %v1243
        %v1398 = vunpack.c.h.b16 %v1243
        %v1399 = vunpack.c.l.b16 %v1244
        %v1400 = vunpack.c.h.b16 %v1244
        %v1401 = vunpack.c.l.b16 %v1245
        %v1402 = vunpack.c.h.b16 %v1245
        %v1403 = vunpack.c.l.b16 %v1246
        %v1404 = vunpack.c.h.b16 %v1246
        %v1405 = vunpack.c.l.b16 %v1247
        %v1406 = vunpack.c.h.b16 %v1247
        %v1407 = vunpack.c.l.b16 %v1248
        %v1408 = vunpack.c.h.b16 %v1248
        %v1409 = vunpack.c.l.b16 %v1249
        %v1410 = vunpack.c.h.b16 %v1249
        %v1411 = vunpack.c.l.b16 %v1250
        %v1412 = vunpack.c.h.b16 %v1250
        %v1413 = vunpack.c.l.b16 %v1251
        %v1414 = vunpack.c.h.b16 %v1251
        %v1415 = vunpack.c.l.b16 %v1252
        %v1416 = vunpack.c.h.b16 %v1252
        %v1417 = vunpack.c.l.b16 %v1253
        %v1418 = vunpack.c.h.b16 %v1253
        %v1419 = vunpack.c.l.b16 %v1254
        %v1420 = vunpack.c.h.b16 %v1254
        %v1421 = vunpack.c.l.b16 %v1255
        %v1422 = vunpack.c.h.b16 %v1255
        %v1423 = vunpack.c.l.b16 %v1256
        %v1424 = vunpack.c.h.b16 %v1256
        %v1425 = vunpack.c.l.b16 %v1257
        %v1426 = vunpack.c.h.b16 %v1257
        %v1427 = vunpack.c.l.b16 %v1258
        %v1428 = vunpack.c.h.b16 %v1258
        %v1429 = vunpack.c.l.b16 %v1259
        %v1430 = vunpack.c.h.b16 %v1259
        %v1431 = vunpack.c.l.b16 %v1260
        %v1432 = vunpack.c.h.b16 %v1260
        %v1433 = vunpack.c.l.b16 %v1261
        %v1434 = vunpack.c.h.b16 %v1261
        %v1435 = vunpack.c.l.b16 %v1262
        %v1436 = vunpack.c.h.b16 %v1262
        %v1437 = vunpack.c.l.b16 %v1263
        %v1438 = vunpack.c.h.b16 %v1263
        %v1439 = vunpack.c.l.b16 %v1264
        %v1440 = vunpack.c.h.b16 %v1264
        %v1441 = vunpack.c.l.b16 %v1265
        %v1442 = vunpack.c.h.b16 %v1265
        %v1443 = vunpack.c.l.b16 %v1266
        %v1444 = vunpack.c.h.b16 %v1266
        %v1445 = vunpack.c.l.b16 %v1267
        %v1446 = vunpack.c.h.b16 %v1267
        %v1447 = vunpack.c.l.b16 %v1268
        %v1448 = vunpack.c.h.b16 %v1268
        %v1449 = vunpack.c.l.b16 %v1269
        %v1450 = vunpack.c.h.b16 %v1269
        %v1451 = vunpack.c.l.b16 %v1270
        %v1452 = vunpack.c.h.b16 %v1270
        %v1453 = vunpack.c.l.b16 %v1271
        %v1454 = vunpack.c.h.b16 %v1271
        %v1455 = vunpack.c.l.b16 %v1272
        %v1456 = vunpack.c.h.b16 %v1272
        %v1457 = vunpack.c.l.b16 %v1273
        %v1458 = vunpack.c.h.b16 %v1273
        %v1459 = vunpack.c.l.b16 %v1274
        %v1460 = vunpack.c.h.b16 %v1274
        %v1461 = vunpack.c.l.b16 %v1275
        %v1462 = vunpack.c.h.b16 %v1275
        %v1463 = vunpack.c.l.b16 %v1276
        %v1464 = vunpack.c.h.b16 %v1276
        %v1465 = vunpack.c.l.b16 %v1277
        %v1466 = vunpack.c.h.b16 %v1277
        %v1467 = vunpack.c.l.b16 %v1278
        %v1468 = vunpack.c.h.b16 %v1278
        %v1469 = vunpack.c.l.b16 %v1279
        %v1470 = vunpack.c.h.b16 %v1279
        %v1471 = vunpack.c.l.b16 %v1280
        %v1472 = vunpack.c.h.b16 %v1280
        %v1473 = vunpack.c.l.b16 %v1281
        %v1474 = vunpack.c.h.b16 %v1281
        %v1475 = vunpack.c.l.b16 %v1282
        %v1476 = vunpack.c.h.b16 %v1282
        %v1477 = vunpack.c.l.b16 %v1283
        %v1478 = vunpack.c.h.b16 %v1283
        %v1479 = vunpack.c.l.b16 %v1284
        %v1480 = vunpack.c.h.b16 %v1284
        %v1481 = vunpack.c.l.b16 %v1285
        %v1482 = vunpack.c.h.b16 %v1285
        %v1483 = vunpack.c.l.b16 %v1286
        %v1484 = vunpack.c.h.b16 %v1286
        %v1485 = vunpack.c.l.b16 %v1287
        %v1486 = vunpack.c.h.b16 %v1287
        %v1487 = vunpack.c.l.b16 %v1288
        %v1488 = vunpack.c.h.b16 %v1288
        %v1489 = vunpack.c.l.b16 %v1289
        %v1490 = vunpack.c.h.b16 %v1289
        %v1491 = vunpack.c.l.b16 %v1290
        %v1492 = vunpack.c.h.b16 %v1290
        %v1493 = vunpack.c.l.b16 %v1291
        %v1494 = vunpack.c.h.b16 %v1291
        %v1495 = vunpack.c.l.b16 %v1292
        %v1496 = vunpack.c.h.b16 %v1292
        %v1497 = vunpack.c.l.b16 %v1293
        %v1498 = vunpack.c.h.b16 %v1293
        %v1499 = vunpack.c.l.b16 %v1294
        %v1500 = vunpack.c.h.b16 %v1294
        %v1501 = vunpack.c.l.b16 %v1295
        %v1502 = vunpack.c.h.b16 %v1295
        %v1503 = vunpack.c.l.b16 %v1296
        %v1504 = vunpack.c.h.b16 %v1296
        %v1505 = vpack.c.b16 %v1379, %v1377
        %v1506 = vpack.c.b16 %v1380, %v1378
        %v1507 = vpack.c.b16 %v1383, %v1381
        %v1508 = vpack.c.b16 %v1384, %v1382
        %v1509 = vpack.c.b16 %v1387, %v1385
        %v1510 = vpack.c.b16 %v1388, %v1386
        %v1511 = vpack.c.b16 %v1391, %v1389
        %v1512 = vpack.c.b16 %v1392, %v1390
        %v1513 = vpack.c.b16 %v1395, %v1393
        %v1514 = vpack.c.b16 %v1396, %v1394
        %v1515 = vpack.c.b16 %v1399, %v1397
        %v1516 = vpack.c.b16 %v1400, %v1398
        %v1517 = vpack.c.b16 %v1403, %v1401
        %v1518 = vpack.c.b16 %v1404, %v1402
        %v1519 = vpack.c.b16 %v1407, %v1405
        %v1520 = vpack.c.b16 %v1408, %v1406
        %v1521 = vpack.c.b16 %v1411, %v1409
        %v1522 = vpack.c.b16 %v1412, %v1410
        %v1523 = vpack.c.b16 %v1415, %v1413
        %v1524 = vpack.c.b16 %v1416, %v1414
        %v1525 = vpack.c.b16 %v1419, %v1417
        %v1526 = vpack.c.b16 %v1420, %v1418
        %v1527 = vpack.c.b16 %v1423, %v1421
        %v1528 = vpack.c.b16 %v1424, %v1422
        %v1529 = vpack.c.b16 %v1427, %v1425
        %v1530 = vpack.c.b16 %v1428, %v1426
        %v1531 = vpack.c.b16 %v1431, %v1429
        %v1532 = vpack.c.b16 %v1432, %v1430
        %v1533 = vpack.c.b16 %v1435, %v1433
        %v1534 = vpack.c.b16 %v1436, %v1434
        %v1535 = vpack.c.b16 %v1439, %v1437
        %v1536 = vpack.c.b16 %v1440, %v1438
        %v1537 = vpack.c.b16 %v1443, %v1441
        %v1538 = vpack.c.b16 %v1444, %v1442
        %v1539 = vpack.c.b16 %v1447, %v1445
        %v1540 = vpack.c.b16 %v1448, %v1446
        %v1541 = vpack.c.b16 %v1451, %v1449
        %v1542 = vpack.c.b16 %v1452, %v1450
        %v1543 = vpack.c.b16 %v1455, %v1453
        %v1544 = vpack.c.b16 %v1456, %v1454
        %v1545 = vpack.c.b16 %v1459, %v1457
        %v1546 = vpack.c.b16 %v1460, %v1458
        %v1547 = vpack.c.b16 %v1463, %v1461
        %v1548 = vpack.c.b16 %v1464, %v1462
        %v1549 = vpack.c.b16 %v1467, %v1465
        %v1550 = vpack.c.b16 %v1468, %v1466
        %v1551 = vpack.c.b16 %v1471, %v1469
        %v1552 = vpack.c.b16 %v1472, %v1470
        %v1553 = vpack.c.b16 %v1475, %v1473
        %v1554 = vpack.c.b16 %v1476, %v1474
        %v1555 = vpack.c.b16 %v1479, %v1477
        %v1556 = vpack.c.b16 %v1480, %v1478
        %v1557 = vpack.c.b16 %v1483, %v1481
        %v1558 = vpack.c.b16 %v1484, %v1482
        %v1559 = vpack.c.b16 %v1487, %v1485
        %v1560 = vpack.c.b16 %v1488, %v1486
        %v1561 = vpack.c.b16 %v1491, %v1489
        %v1562 = vpack.c.b16 %v1492, %v1490
        %v1563 = vpack.c.b16 %v1495, %v1493
        %v1564 = vpack.c.b16 %v1496, %v1494
        %v1565 = vpack.c.b16 %v1499, %v1497
        %v1566 = vpack.c.b16 %v1500, %v1498
        %v1567 = vpack.c.b16 %v1503, %v1501
        %v1568 = vpack.c.b16 %v1504, %v1502
        %1633 = vmatpush.bf16.msra.mxu0 %v1304
        %1634 = vmatpush.bf16.msra.mxu0 %v1303
        %1635 = vmatpush.bf16.msra.mxu0 %v1302
        %1636 = vmatpush.bf16.msra.mxu0 %v1301
        %1637 = vmatpush.bf16.msra.mxu0 %v1300
        %1638 = vmatpush.bf16.msra.mxu0 %v1299
        %1639 = vmatpush.bf16.msra.mxu0 %v1298
        %1640 = vmatpush.bf16.msra.mxu0 %v1297
        %1641 = vmatmul.bf16.gmra.mxu0 %v1505
        %v1642 = vpop.f32.mrf.mxu0
        %v1643 = vadd.f32 0.0, %v1642
        %v1644 = vpop.f32.mrf.mxu0
        %v1645 = vadd.f32 0.0, %v1644
        %1646 = vmatmul.bf16.gmra.mxu0 %v1507
        %v1647 = vpop.f32.mrf.mxu0
        %v1648 = vadd.f32 0.0, %v1647
        %v1649 = vpop.f32.mrf.mxu0
        %v1650 = vadd.f32 0.0, %v1649
        %1651 = vmatmul.bf16.gmra.mxu0 %v1509
        %v1652 = vpop.f32.mrf.mxu0
        %v1653 = vadd.f32 0.0, %v1652
        %v1654 = vpop.f32.mrf.mxu0
        %v1655 = vadd.f32 0.0, %v1654
        %1656 = vmatmul.bf16.gmra.mxu0 %v1511
        %v1657 = vpop.f32.mrf.mxu0
        %v1658 = vadd.f32 0.0, %v1657
        %v1659 = vpop.f32.mrf.mxu0
        %v1660 = vadd.f32 0.0, %v1659
        %1661 = vmatmul.bf16.gmra.mxu0 %v1513
        %v1662 = vpop.f32.mrf.mxu0
        %v1663 = vadd.f32 0.0, %v1662
        %v1664 = vpop.f32.mrf.mxu0
        %v1665 = vadd.f32 0.0, %v1664
        %1666 = vmatmul.bf16.gmra.mxu0 %v1515
        %v1667 = vpop.f32.mrf.mxu0
        %v1668 = vadd.f32 0.0, %v1667
        %v1669 = vpop.f32.mrf.mxu0
        %v1670 = vadd.f32 0.0, %v1669
        %1671 = vmatmul.bf16.gmra.mxu0 %v1517
        %v1672 = vpop.f32.mrf.mxu0
        %v1673 = vadd.f32 0.0, %v1672
        %v1674 = vpop.f32.mrf.mxu0
        %v1675 = vadd.f32 0.0, %v1674
        %1676 = vmatmul.bf16.gmra.mxu0 %v1519
        %v1677 = vpop.f32.mrf.mxu0
        %v1678 = vadd.f32 0.0, %v1677
        %v1679 = vpop.f32.mrf.mxu0
        %v1680 = vadd.f32 0.0, %v1679
        %1681 = vmatmul.bf16.gmra.mxu0 %v1521
        %v1682 = vpop.f32.mrf.mxu0
        %v1683 = vadd.f32 0.0, %v1682
        %v1684 = vpop.f32.mrf.mxu0
        %v1685 = vadd.f32 0.0, %v1684
        %1686 = vmatmul.bf16.gmra.mxu0 %v1523
        %v1687 = vpop.f32.mrf.mxu0
        %v1688 = vadd.f32 0.0, %v1687
        %v1689 = vpop.f32.mrf.mxu0
        %v1690 = vadd.f32 0.0, %v1689
        %1691 = vmatmul.bf16.gmra.mxu0 %v1525
        %v1692 = vpop.f32.mrf.mxu0
        %v1693 = vadd.f32 0.0, %v1692
        %v1694 = vpop.f32.mrf.mxu0
        %v1695 = vadd.f32 0.0, %v1694
        %1696 = vmatmul.bf16.gmra.mxu0 %v1527
        %v1697 = vpop.f32.mrf.mxu0
        %v1698 = vadd.f32 0.0, %v1697
        %v1699 = vpop.f32.mrf.mxu0
        %v1700 = vadd.f32 0.0, %v1699
        %1701 = vmatmul.bf16.gmra.mxu0 %v1529
        %v1702 = vpop.f32.mrf.mxu0
        %v1703 = vadd.f32 0.0, %v1702
        %v1704 = vpop.f32.mrf.mxu0
        %v1705 = vadd.f32 0.0, %v1704
        %1706 = vmatmul.bf16.gmra.mxu0 %v1531
        %v1707 = vpop.f32.mrf.mxu0
        %v1708 = vadd.f32 0.0, %v1707
        %v1709 = vpop.f32.mrf.mxu0
        %v1710 = vadd.f32 0.0, %v1709
        %1711 = vmatmul.bf16.gmra.mxu0 %v1533
        %v1712 = vpop.f32.mrf.mxu0
        %v1713 = vadd.f32 0.0, %v1712
        %v1714 = vpop.f32.mrf.mxu0
        %v1715 = vadd.f32 0.0, %v1714
        %1716 = vmatmul.bf16.gmra.mxu0 %v1535
        %v1717 = vpop.f32.mrf.mxu0
        %v1718 = vadd.f32 0.0, %v1717
        %v1719 = vpop.f32.mrf.mxu0
        %v1720 = vadd.f32 0.0, %v1719
        %1721 = vmatmul.bf16.gmra.mxu0 %v1537
        %v1722 = vpop.f32.mrf.mxu0
        %v1723 = vadd.f32 0.0, %v1722
        %v1724 = vpop.f32.mrf.mxu0
        %v1725 = vadd.f32 0.0, %v1724
        %1726 = vmatmul.bf16.gmra.mxu0 %v1539
        %v1727 = vpop.f32.mrf.mxu0
        %v1728 = vadd.f32 0.0, %v1727
        %v1729 = vpop.f32.mrf.mxu0
        %v1730 = vadd.f32 0.0, %v1729
        %1731 = vmatmul.bf16.gmra.mxu0 %v1541
        %v1732 = vpop.f32.mrf.mxu0
        %v1733 = vadd.f32 0.0, %v1732
        %v1734 = vpop.f32.mrf.mxu0
        %v1735 = vadd.f32 0.0, %v1734
        %1736 = vmatmul.bf16.gmra.mxu0 %v1543
        %v1737 = vpop.f32.mrf.mxu0
        %v1738 = vadd.f32 0.0, %v1737
        %v1739 = vpop.f32.mrf.mxu0
        %v1740 = vadd.f32 0.0, %v1739
        %1741 = vmatmul.bf16.gmra.mxu0 %v1545
        %v1742 = vpop.f32.mrf.mxu0
        %v1743 = vadd.f32 0.0, %v1742
        %v1744 = vpop.f32.mrf.mxu0
        %v1745 = vadd.f32 0.0, %v1744
        %1746 = vmatmul.bf16.gmra.mxu0 %v1547
        %v1747 = vpop.f32.mrf.mxu0
        %v1748 = vadd.f32 0.0, %v1747
        %v1749 = vpop.f32.mrf.mxu0
        %v1750 = vadd.f32 0.0, %v1749
        %1751 = vmatmul.bf16.gmra.mxu0 %v1549
        %v1752 = vpop.f32.mrf.mxu0
        %v1753 = vadd.f32 0.0, %v1752
        %v1754 = vpop.f32.mrf.mxu0
        %v1755 = vadd.f32 0.0, %v1754
        %1756 = vmatmul.bf16.gmra.mxu0 %v1551
        %v1757 = vpop.f32.mrf.mxu0
        %v1758 = vadd.f32 0.0, %v1757
        %v1759 = vpop.f32.mrf.mxu0
        %v1760 = vadd.f32 0.0, %v1759
        %1761 = vmatmul.bf16.gmra.mxu0 %v1553
        %v1762 = vpop.f32.mrf.mxu0
        %v1763 = vadd.f32 0.0, %v1762
        %v1764 = vpop.f32.mrf.mxu0
        %v1765 = vadd.f32 0.0, %v1764
        %1766 = vmatmul.bf16.gmra.mxu0 %v1555
        %v1767 = vpop.f32.mrf.mxu0
        %v1768 = vadd.f32 0.0, %v1767
        %v1769 = vpop.f32.mrf.mxu0
        %v1770 = vadd.f32 0.0, %v1769
        %1771 = vmatmul.bf16.gmra.mxu0 %v1557
        %v1772 = vpop.f32.mrf.mxu0
        %v1773 = vadd.f32 0.0, %v1772
        %v1774 = vpop.f32.mrf.mxu0
        %v1775 = vadd.f32 0.0, %v1774
        %1776 = vmatmul.bf16.gmra.mxu0 %v1559
        %v1777 = vpop.f32.mrf.mxu0
        %v1778 = vadd.f32 0.0, %v1777
        %v1779 = vpop.f32.mrf.mxu0
        %v1780 = vadd.f32 0.0, %v1779
        %1781 = vmatmul.bf16.gmra.mxu0 %v1561
        %v1782 = vpop.f32.mrf.mxu0
        %v1783 = vadd.f32 0.0, %v1782
        %v1784 = vpop.f32.mrf.mxu0
        %v1785 = vadd.f32 0.0, %v1784
        %1786 = vmatmul.bf16.gmra.mxu0 %v1563
        %v1787 = vpop.f32.mrf.mxu0
        %v1788 = vadd.f32 0.0, %v1787
        %v1789 = vpop.f32.mrf.mxu0
        %v1790 = vadd.f32 0.0, %v1789
        %1791 = vmatmul.bf16.gmra.mxu0 %v1565
        %v1792 = vpop.f32.mrf.mxu0
        %v1793 = vadd.f32 0.0, %v1792
        %v1794 = vpop.f32.mrf.mxu0
        %v1795 = vadd.f32 0.0, %v1794
        %1796 = vmatmul.bf16.gmra.mxu0 %v1567
        %v1797 = vpop.f32.mrf.mxu0
        %v1798 = vadd.f32 0.0, %v1797
        %v1799 = vpop.f32.mrf.mxu0
        %v1800 = vadd.f32 0.0, %v1799
        %1801 = vdwg.mxu0
        %1802 = vmatpush.bf16.msra.mxu0 %v1312
        %1803 = vmatpush.bf16.msra.mxu0 %v1311
        %1804 = vmatpush.bf16.msra.mxu0 %v1310
        %1805 = vmatpush.bf16.msra.mxu0 %v1309
        %1806 = vmatpush.bf16.msra.mxu0 %v1308
        %1807 = vmatpush.bf16.msra.mxu0 %v1307
        %1808 = vmatpush.bf16.msra.mxu0 %v1306
        %1809 = vmatpush.bf16.msra.mxu0 %v1305
        %1810 = vmatmul.bf16.gmra.mxu0 %v1506
        %v1811 = vpop.f32.mrf.mxu0
        %v1812 = vadd.f32 %v1643, %v1811
        %v1813 = vpop.f32.mrf.mxu0
        %v1814 = vadd.f32 %v1645, %v1813
        %1815 = vmatmul.bf16.gmra.mxu0 %v1508
        %v1816 = vpop.f32.mrf.mxu0
        %v1817 = vadd.f32 %v1648, %v1816
        %v1818 = vpop.f32.mrf.mxu0
        %v1819 = vadd.f32 %v1650, %v1818
        %1820 = vmatmul.bf16.gmra.mxu0 %v1510
        %v1821 = vpop.f32.mrf.mxu0
        %v1822 = vadd.f32 %v1653, %v1821
        %v1823 = vpop.f32.mrf.mxu0
        %v1824 = vadd.f32 %v1655, %v1823
        %1825 = vmatmul.bf16.gmra.mxu0 %v1512
        %v1826 = vpop.f32.mrf.mxu0
        %v1827 = vadd.f32 %v1658, %v1826
        %v1828 = vpop.f32.mrf.mxu0
        %v1829 = vadd.f32 %v1660, %v1828
        %1830 = vmatmul.bf16.gmra.mxu0 %v1514
        %v1831 = vpop.f32.mrf.mxu0
        %v1832 = vadd.f32 %v1663, %v1831
        %v1833 = vpop.f32.mrf.mxu0
        %v1834 = vadd.f32 %v1665, %v1833
        %1835 = vmatmul.bf16.gmra.mxu0 %v1516
        %v1836 = vpop.f32.mrf.mxu0
        %v1837 = vadd.f32 %v1668, %v1836
        %v1838 = vpop.f32.mrf.mxu0
        %v1839 = vadd.f32 %v1670, %v1838
        %1840 = vmatmul.bf16.gmra.mxu0 %v1518
        %v1841 = vpop.f32.mrf.mxu0
        %v1842 = vadd.f32 %v1673, %v1841
        %v1843 = vpop.f32.mrf.mxu0
        %v1844 = vadd.f32 %v1675, %v1843
        %1845 = vmatmul.bf16.gmra.mxu0 %v1520
        %v1846 = vpop.f32.mrf.mxu0
        %v1847 = vadd.f32 %v1678, %v1846
        %v1848 = vpop.f32.mrf.mxu0
        %v1849 = vadd.f32 %v1680, %v1848
        %1850 = vmatmul.bf16.gmra.mxu0 %v1522
        %v1851 = vpop.f32.mrf.mxu0
        %v1852 = vadd.f32 %v1683, %v1851
        %v1853 = vpop.f32.mrf.mxu0
        %v1854 = vadd.f32 %v1685, %v1853
        %1855 = vmatmul.bf16.gmra.mxu0 %v1524
        %v1856 = vpop.f32.mrf.mxu0
        %v1857 = vadd.f32 %v1688, %v1856
        %v1858 = vpop.f32.mrf.mxu0
        %v1859 = vadd.f32 %v1690, %v1858
        %1860 = vmatmul.bf16.gmra.mxu0 %v1526
        %v1861 = vpop.f32.mrf.mxu0
        %v1862 = vadd.f32 %v1693, %v1861
        %v1863 = vpop.f32.mrf.mxu0
        %v1864 = vadd.f32 %v1695, %v1863
        %1865 = vmatmul.bf16.gmra.mxu0 %v1528
        %v1866 = vpop.f32.mrf.mxu0
        %v1867 = vadd.f32 %v1698, %v1866
        %v1868 = vpop.f32.mrf.mxu0
        %v1869 = vadd.f32 %v1700, %v1868
        %1870 = vmatmul.bf16.gmra.mxu0 %v1530
        %v1871 = vpop.f32.mrf.mxu0
        %v1872 = vadd.f32 %v1703, %v1871
        %v1873 = vpop.f32.mrf.mxu0
        %v1874 = vadd.f32 %v1705, %v1873
        %1875 = vmatmul.bf16.gmra.mxu0 %v1532
        %v1876 = vpop.f32.mrf.mxu0
        %v1877 = vadd.f32 %v1708, %v1876
        %v1878 = vpop.f32.mrf.mxu0
        %v1879 = vadd.f32 %v1710, %v1878
        %1880 = vmatmul.bf16.gmra.mxu0 %v1534
        %v1881 = vpop.f32.mrf.mxu0
        %v1882 = vadd.f32 %v1713, %v1881
        %v1883 = vpop.f32.mrf.mxu0
        %v1884 = vadd.f32 %v1715, %v1883
        %1885 = vmatmul.bf16.gmra.mxu0 %v1536
        %v1886 = vpop.f32.mrf.mxu0
        %v1887 = vadd.f32 %v1718, %v1886
        %v1888 = vpop.f32.mrf.mxu0
        %v1889 = vadd.f32 %v1720, %v1888
        %1890 = vmatmul.bf16.gmra.mxu0 %v1538
        %v1891 = vpop.f32.mrf.mxu0
        %v1892 = vadd.f32 %v1723, %v1891
        %v1893 = vpop.f32.mrf.mxu0
        %v1894 = vadd.f32 %v1725, %v1893
        %1895 = vmatmul.bf16.gmra.mxu0 %v1540
        %v1896 = vpop.f32.mrf.mxu0
        %v1897 = vadd.f32 %v1728, %v1896
        %v1898 = vpop.f32.mrf.mxu0
        %v1899 = vadd.f32 %v1730, %v1898
        %1900 = vmatmul.bf16.gmra.mxu0 %v1542
        %v1901 = vpop.f32.mrf.mxu0
        %v1902 = vadd.f32 %v1733, %v1901
        %v1903 = vpop.f32.mrf.mxu0
        %v1904 = vadd.f32 %v1735, %v1903
        %1905 = vmatmul.bf16.gmra.mxu0 %v1544
        %v1906 = vpop.f32.mrf.mxu0
        %v1907 = vadd.f32 %v1738, %v1906
        %v1908 = vpop.f32.mrf.mxu0
        %v1909 = vadd.f32 %v1740, %v1908
        %1910 = vmatmul.bf16.gmra.mxu0 %v1546
        %v1911 = vpop.f32.mrf.mxu0
        %v1912 = vadd.f32 %v1743, %v1911
        %v1913 = vpop.f32.mrf.mxu0
        %v1914 = vadd.f32 %v1745, %v1913
        %1915 = vmatmul.bf16.gmra.mxu0 %v1548
        %v1916 = vpop.f32.mrf.mxu0
        %v1917 = vadd.f32 %v1748, %v1916
        %v1918 = vpop.f32.mrf.mxu0
        %v1919 = vadd.f32 %v1750, %v1918
        %1920 = vmatmul.bf16.gmra.mxu0 %v1550
        %v1921 = vpop.f32.mrf.mxu0
        %v1922 = vadd.f32 %v1753, %v1921
        %v1923 = vpop.f32.mrf.mxu0
        %v1924 = vadd.f32 %v1755, %v1923
        %1925 = vmatmul.bf16.gmra.mxu0 %v1552
        %v1926 = vpop.f32.mrf.mxu0
        %v1927 = vadd.f32 %v1758, %v1926
        %v1928 = vpop.f32.mrf.mxu0
        %v1929 = vadd.f32 %v1760, %v1928
        %1930 = vmatmul.bf16.gmra.mxu0 %v1554
        %v1931 = vpop.f32.mrf.mxu0
        %v1932 = vadd.f32 %v1763, %v1931
        %v1933 = vpop.f32.mrf.mxu0
        %v1934 = vadd.f32 %v1765, %v1933
        %1935 = vmatmul.bf16.gmra.mxu0 %v1556
        %v1936 = vpop.f32.mrf.mxu0
        %v1937 = vadd.f32 %v1768, %v1936
        %v1938 = vpop.f32.mrf.mxu0
        %v1939 = vadd.f32 %v1770, %v1938
        %1940 = vmatmul.bf16.gmra.mxu0 %v1558
        %v1941 = vpop.f32.mrf.mxu0
        %v1942 = vadd.f32 %v1773, %v1941
        %v1943 = vpop.f32.mrf.mxu0
        %v1944 = vadd.f32 %v1775, %v1943
        %1945 = vmatmul.bf16.gmra.mxu0 %v1560
        %v1946 = vpop.f32.mrf.mxu0
        %v1947 = vadd.f32 %v1778, %v1946
        %v1948 = vpop.f32.mrf.mxu0
        %v1949 = vadd.f32 %v1780, %v1948
        %1950 = vmatmul.bf16.gmra.mxu0 %v1562
        %v1951 = vpop.f32.mrf.mxu0
        %v1952 = vadd.f32 %v1783, %v1951
        %v1953 = vpop.f32.mrf.mxu0
        %v1954 = vadd.f32 %v1785, %v1953
        %1955 = vmatmul.bf16.gmra.mxu0 %v1564
        %v1956 = vpop.f32.mrf.mxu0
        %v1957 = vadd.f32 %v1788, %v1956
        %v1958 = vpop.f32.mrf.mxu0
        %v1959 = vadd.f32 %v1790, %v1958
        %1960 = vmatmul.bf16.gmra.mxu0 %v1566
        %v1961 = vpop.f32.mrf.mxu0
        %v1962 = vadd.f32 %v1793, %v1961
        %v1963 = vpop.f32.mrf.mxu0
        %v1964 = vadd.f32 %v1795, %v1963
        %1965 = vmatmul.bf16.gmra.mxu0 %v1568
        %v1966 = vpop.f32.mrf.mxu0
        %v1967 = vadd.f32 %v1798, %v1966
        %v1968 = vpop.f32.mrf.mxu0
        %v1969 = vadd.f32 %v1800, %v1968
        %1970 = vdwg.mxu0
        %v1971 = vsel %vm1200, %v1812, 0.0
        %1972 = vadd.xlane.f32.xlu0 %v1971
        %v1973 = vpop.xlane.xlu0 %1972
        %v1974 = vsel %vm1200, %v1814, 0.0
        %1975 = vadd.xlane.f32.xlu0 %v1974
        %v1976 = vpop.xlane.xlu0 %1975
        %v1977 = vsel %vm1200, %v1817, 0.0
        %1978 = vadd.xlane.f32.xlu0 %v1977
        %v1979 = vpop.xlane.xlu0 %1978
        %v1980 = vsel %vm1200, %v1819, 0.0
        %1981 = vadd.xlane.f32.xlu0 %v1980
        %v1982 = vpop.xlane.xlu0 %1981
        %v1983 = vsel %vm1200, %v1822, 0.0
        %1984 = vadd.xlane.f32.xlu0 %v1983
        %v1985 = vpop.xlane.xlu0 %1984
        %v1986 = vsel %vm1200, %v1824, 0.0
        %1987 = vadd.xlane.f32.xlu0 %v1986
        %v1988 = vpop.xlane.xlu0 %1987
        %v1989 = vsel %vm1200, %v1827, 0.0
        %1990 = vadd.xlane.f32.xlu0 %v1989
        %v1991 = vpop.xlane.xlu0 %1990
        %v1992 = vsel %vm1200, %v1829, 0.0
        %1993 = vadd.xlane.f32.xlu0 %v1992
        %v1994 = vpop.xlane.xlu0 %1993
        %v1995 = vsel %vm1200, %v1832, 0.0
        %1996 = vadd.xlane.f32.xlu0 %v1995
        %v1997 = vpop.xlane.xlu0 %1996
        %v1998 = vsel %vm1200, %v1834, 0.0
        %1999 = vadd.xlane.f32.xlu0 %v1998
        %v2000 = vpop.xlane.xlu0 %1999
        %v2001 = vsel %vm1200, %v1837, 0.0
        %2002 = vadd.xlane.f32.xlu0 %v2001
        %v2003 = vpop.xlane.xlu0 %2002
        %v2004 = vsel %vm1200, %v1839, 0.0
        %2005 = vadd.xlane.f32.xlu0 %v2004
        %v2006 = vpop.xlane.xlu0 %2005
        %v2007 = vsel %vm1200, %v1842, 0.0
        %2008 = vadd.xlane.f32.xlu0 %v2007
        %v2009 = vpop.xlane.xlu0 %2008
        %v2010 = vsel %vm1200, %v1844, 0.0
        %2011 = vadd.xlane.f32.xlu0 %v2010
        %v2012 = vpop.xlane.xlu0 %2011
        %v2013 = vsel %vm1200, %v1847, 0.0
        %2014 = vadd.xlane.f32.xlu0 %v2013
        %v2015 = vpop.xlane.xlu0 %2014
        %v2016 = vsel %vm1200, %v1849, 0.0
        %2017 = vadd.xlane.f32.xlu0 %v2016
        %v2018 = vpop.xlane.xlu0 %2017
        %v2019 = vsel %vm1200, %v1852, 0.0
        %2020 = vadd.xlane.f32.xlu0 %v2019
        %v2021 = vpop.xlane.xlu0 %2020
        %v2022 = vsel %vm1200, %v1854, 0.0
        %2023 = vadd.xlane.f32.xlu0 %v2022
        %v2024 = vpop.xlane.xlu0 %2023
        %v2025 = vsel %vm1200, %v1857, 0.0
        %2026 = vadd.xlane.f32.xlu0 %v2025
        %v2027 = vpop.xlane.xlu0 %2026
        %v2028 = vsel %vm1200, %v1859, 0.0
        %2029 = vadd.xlane.f32.xlu0 %v2028
        %v2030 = vpop.xlane.xlu0 %2029
        %v2031 = vsel %vm1200, %v1862, 0.0
        %2032 = vadd.xlane.f32.xlu0 %v2031
        %v2033 = vpop.xlane.xlu0 %2032
        %v2034 = vsel %vm1200, %v1864, 0.0
        %2035 = vadd.xlane.f32.xlu0 %v2034
        %v2036 = vpop.xlane.xlu0 %2035
        %v2037 = vsel %vm1200, %v1867, 0.0
        %2038 = vadd.xlane.f32.xlu0 %v2037
        %v2039 = vpop.xlane.xlu0 %2038
        %v2040 = vsel %vm1200, %v1869, 0.0
        %2041 = vadd.xlane.f32.xlu0 %v2040
        %v2042 = vpop.xlane.xlu0 %2041
        %v2043 = vsel %vm1200, %v1872, 0.0
        %2044 = vadd.xlane.f32.xlu0 %v2043
        %v2045 = vpop.xlane.xlu0 %2044
        %v2046 = vsel %vm1200, %v1874, 0.0
        %2047 = vadd.xlane.f32.xlu0 %v2046
        %v2048 = vpop.xlane.xlu0 %2047
        %v2049 = vsel %vm1200, %v1877, 0.0
        %2050 = vadd.xlane.f32.xlu0 %v2049
        %v2051 = vpop.xlane.xlu0 %2050
        %v2052 = vsel %vm1200, %v1879, 0.0
        %2053 = vadd.xlane.f32.xlu0 %v2052
        %v2054 = vpop.xlane.xlu0 %2053
        %v2055 = vsel %vm1200, %v1882, 0.0
        %2056 = vadd.xlane.f32.xlu0 %v2055
        %v2057 = vpop.xlane.xlu0 %2056
        %v2058 = vsel %vm1200, %v1884, 0.0
        %2059 = vadd.xlane.f32.xlu0 %v2058
        %v2060 = vpop.xlane.xlu0 %2059
        %v2061 = vsel %vm1200, %v1887, 0.0
        %2062 = vadd.xlane.f32.xlu0 %v2061
        %v2063 = vpop.xlane.xlu0 %2062
        %v2064 = vsel %vm1200, %v1889, 0.0
        %2065 = vadd.xlane.f32.xlu0 %v2064
        %v2066 = vpop.xlane.xlu0 %2065
        %v2067 = vsel %vm1200, %v1892, 0.0
        %2068 = vadd.xlane.f32.xlu0 %v2067
        %v2069 = vpop.xlane.xlu0 %2068
        %v2070 = vsel %vm1200, %v1894, 0.0
        %2071 = vadd.xlane.f32.xlu0 %v2070
        %v2072 = vpop.xlane.xlu0 %2071
        %v2073 = vsel %vm1200, %v1897, 0.0
        %2074 = vadd.xlane.f32.xlu0 %v2073
        %v2075 = vpop.xlane.xlu0 %2074
        %v2076 = vsel %vm1200, %v1899, 0.0
        %2077 = vadd.xlane.f32.xlu0 %v2076
        %v2078 = vpop.xlane.xlu0 %2077
        %v2079 = vsel %vm1200, %v1902, 0.0
        %2080 = vadd.xlane.f32.xlu0 %v2079
        %v2081 = vpop.xlane.xlu0 %2080
        %v2082 = vsel %vm1200, %v1904, 0.0
        %2083 = vadd.xlane.f32.xlu0 %v2082
        %v2084 = vpop.xlane.xlu0 %2083
        %v2085 = vsel %vm1200, %v1907, 0.0
        %2086 = vadd.xlane.f32.xlu0 %v2085
        %v2087 = vpop.xlane.xlu0 %2086
        %v2088 = vsel %vm1200, %v1909, 0.0
        %2089 = vadd.xlane.f32.xlu0 %v2088
        %v2090 = vpop.xlane.xlu0 %2089
        %v2091 = vsel %vm1200, %v1912, 0.0
        %2092 = vadd.xlane.f32.xlu0 %v2091
        %v2093 = vpop.xlane.xlu0 %2092
        %v2094 = vsel %vm1200, %v1914, 0.0
        %2095 = vadd.xlane.f32.xlu0 %v2094
        %v2096 = vpop.xlane.xlu0 %2095
        %v2097 = vsel %vm1200, %v1917, 0.0
        %2098 = vadd.xlane.f32.xlu0 %v2097
        %v2099 = vpop.xlane.xlu0 %2098
        %v2100 = vsel %vm1200, %v1919, 0.0
        %2101 = vadd.xlane.f32.xlu0 %v2100
        %v2102 = vpop.xlane.xlu0 %2101
        %v2103 = vsel %vm1200, %v1922, 0.0
        %2104 = vadd.xlane.f32.xlu0 %v2103
        %v2105 = vpop.xlane.xlu0 %2104
        %v2106 = vsel %vm1200, %v1924, 0.0
        %2107 = vadd.xlane.f32.xlu0 %v2106
        %v2108 = vpop.xlane.xlu0 %2107
        %v2109 = vsel %vm1200, %v1927, 0.0
        %2110 = vadd.xlane.f32.xlu0 %v2109
        %v2111 = vpop.xlane.xlu0 %2110
        %v2112 = vsel %vm1200, %v1929, 0.0
        %2113 = vadd.xlane.f32.xlu0 %v2112
        %v2114 = vpop.xlane.xlu0 %2113
        %v2115 = vsel %vm1200, %v1932, 0.0
        %2116 = vadd.xlane.f32.xlu0 %v2115
        %v2117 = vpop.xlane.xlu0 %2116
        %v2118 = vsel %vm1200, %v1934, 0.0
        %2119 = vadd.xlane.f32.xlu0 %v2118
        %v2120 = vpop.xlane.xlu0 %2119
        %v2121 = vsel %vm1200, %v1937, 0.0
        %2122 = vadd.xlane.f32.xlu0 %v2121
        %v2123 = vpop.xlane.xlu0 %2122
        %v2124 = vsel %vm1200, %v1939, 0.0
        %2125 = vadd.xlane.f32.xlu0 %v2124
        %v2126 = vpop.xlane.xlu0 %2125
        %v2127 = vsel %vm1200, %v1942, 0.0
        %2128 = vadd.xlane.f32.xlu0 %v2127
        %v2129 = vpop.xlane.xlu0 %2128
        %v2130 = vsel %vm1200, %v1944, 0.0
        %2131 = vadd.xlane.f32.xlu0 %v2130
        %v2132 = vpop.xlane.xlu0 %2131
        %v2133 = vsel %vm1200, %v1947, 0.0
        %2134 = vadd.xlane.f32.xlu0 %v2133
        %v2135 = vpop.xlane.xlu0 %2134
        %v2136 = vsel %vm1200, %v1949, 0.0
        %2137 = vadd.xlane.f32.xlu0 %v2136
        %v2138 = vpop.xlane.xlu0 %2137
        %v2139 = vsel %vm1200, %v1952, 0.0
        %2140 = vadd.xlane.f32.xlu0 %v2139
        %v2141 = vpop.xlane.xlu0 %2140
        %v2142 = vsel %vm1200, %v1954, 0.0
        %2143 = vadd.xlane.f32.xlu0 %v2142
        %v2144 = vpop.xlane.xlu0 %2143
        %v2145 = vsel %vm1200, %v1957, 0.0
        %2146 = vadd.xlane.f32.xlu0 %v2145
        %v2147 = vpop.xlane.xlu0 %2146
        %v2148 = vsel %vm1200, %v1959, 0.0
        %2149 = vadd.xlane.f32.xlu0 %v2148
        %v2150 = vpop.xlane.xlu0 %2149
        %v2151 = vsel %vm1200, %v1962, 0.0
        %2152 = vadd.xlane.f32.xlu0 %v2151
        %v2153 = vpop.xlane.xlu0 %2152
        %v2154 = vsel %vm1200, %v1964, 0.0
        %2155 = vadd.xlane.f32.xlu0 %v2154
        %v2156 = vpop.xlane.xlu0 %2155
        %v2157 = vsel %vm1200, %v1967, 0.0
        %2158 = vadd.xlane.f32.xlu0 %v2157
        %v2159 = vpop.xlane.xlu0 %2158
        %v2160 = vsel %vm1200, %v1969, 0.0
        %2161 = vadd.xlane.f32.xlu0 %v2160
        %v2162 = vpop.xlane.xlu0 %2161
        %v2163 = vmul.f32 %v1812, %v1812
        %v2164 = vmul.f32 %v1814, %v1814
        %v2165 = vmul.f32 %v1817, %v1817
        %v2166 = vmul.f32 %v1819, %v1819
        %v2167 = vmul.f32 %v1822, %v1822
        %v2168 = vmul.f32 %v1824, %v1824
        %v2169 = vmul.f32 %v1827, %v1827
        %v2170 = vmul.f32 %v1829, %v1829
        %v2171 = vmul.f32 %v1832, %v1832
        %v2172 = vmul.f32 %v1834, %v1834
        %v2173 = vmul.f32 %v1837, %v1837
        %v2174 = vmul.f32 %v1839, %v1839
        %v2175 = vmul.f32 %v1842, %v1842
        %v2176 = vmul.f32 %v1844, %v1844
        %v2177 = vmul.f32 %v1847, %v1847
        %v2178 = vmul.f32 %v1849, %v1849
        %v2179 = vmul.f32 %v1852, %v1852
        %v2180 = vmul.f32 %v1854, %v1854
        %v2181 = vmul.f32 %v1857, %v1857
        %v2182 = vmul.f32 %v1859, %v1859
        %v2183 = vmul.f32 %v1862, %v1862
        %v2184 = vmul.f32 %v1864, %v1864
        %v2185 = vmul.f32 %v1867, %v1867
        %v2186 = vmul.f32 %v1869, %v1869
        %v2187 = vmul.f32 %v1872, %v1872
        %v2188 = vmul.f32 %v1874, %v1874
        %v2189 = vmul.f32 %v1877, %v1877
        %v2190 = vmul.f32 %v1879, %v1879
        %v2191 = vmul.f32 %v1882, %v1882
        %v2192 = vmul.f32 %v1884, %v1884
        %v2193 = vmul.f32 %v1887, %v1887
        %v2194 = vmul.f32 %v1889, %v1889
        %v2195 = vmul.f32 %v1892, %v1892
        %v2196 = vmul.f32 %v1894, %v1894
        %v2197 = vmul.f32 %v1897, %v1897
        %v2198 = vmul.f32 %v1899, %v1899
        %v2199 = vmul.f32 %v1902, %v1902
        %v2200 = vmul.f32 %v1904, %v1904
        %v2201 = vmul.f32 %v1907, %v1907
        %v2202 = vmul.f32 %v1909, %v1909
        %v2203 = vmul.f32 %v1912, %v1912
        %v2204 = vmul.f32 %v1914, %v1914
        %v2205 = vmul.f32 %v1917, %v1917
        %v2206 = vmul.f32 %v1919, %v1919
        %v2207 = vmul.f32 %v1922, %v1922
        %v2208 = vmul.f32 %v1924, %v1924
        %v2209 = vmul.f32 %v1927, %v1927
        %v2210 = vmul.f32 %v1929, %v1929
        %v2211 = vmul.f32 %v1932, %v1932
        %v2212 = vmul.f32 %v1934, %v1934
        %v2213 = vmul.f32 %v1937, %v1937
        %v2214 = vmul.f32 %v1939, %v1939
        %v2215 = vmul.f32 %v1942, %v1942
        %v2216 = vmul.f32 %v1944, %v1944
        %v2217 = vmul.f32 %v1947, %v1947
        %v2218 = vmul.f32 %v1949, %v1949
        %v2219 = vmul.f32 %v1952, %v1952
        %v2220 = vmul.f32 %v1954, %v1954
        %v2221 = vmul.f32 %v1957, %v1957
        %v2222 = vmul.f32 %v1959, %v1959
        %v2223 = vmul.f32 %v1962, %v1962
        %v2224 = vmul.f32 %v1964, %v1964
        %v2225 = vmul.f32 %v1967, %v1967
        %v2226 = vmul.f32 %v1969, %v1969
        %v2227 = vsel %vm1200, %v2163, 0.0
        %2228 = vadd.xlane.f32.xlu0 %v2227
        %v2229 = vpop.xlane.xlu0 %2228
        %v2230 = vsel %vm1200, %v2164, 0.0
        %2231 = vadd.xlane.f32.xlu0 %v2230
        %v2232 = vpop.xlane.xlu0 %2231
        %v2233 = vsel %vm1200, %v2165, 0.0
        %2234 = vadd.xlane.f32.xlu0 %v2233
        %v2235 = vpop.xlane.xlu0 %2234
        %v2236 = vsel %vm1200, %v2166, 0.0
        %2237 = vadd.xlane.f32.xlu0 %v2236
        %v2238 = vpop.xlane.xlu0 %2237
        %v2239 = vsel %vm1200, %v2167, 0.0
        %2240 = vadd.xlane.f32.xlu0 %v2239
        %v2241 = vpop.xlane.xlu0 %2240
        %v2242 = vsel %vm1200, %v2168, 0.0
        %2243 = vadd.xlane.f32.xlu0 %v2242
        %v2244 = vpop.xlane.xlu0 %2243
        %v2245 = vsel %vm1200, %v2169, 0.0
        %2246 = vadd.xlane.f32.xlu0 %v2245
        %v2247 = vpop.xlane.xlu0 %2246
        %v2248 = vsel %vm1200, %v2170, 0.0
        %2249 = vadd.xlane.f32.xlu0 %v2248
        %v2250 = vpop.xlane.xlu0 %2249
        %v2251 = vsel %vm1200, %v2171, 0.0
        %2252 = vadd.xlane.f32.xlu0 %v2251
        %v2253 = vpop.xlane.xlu0 %2252
        %v2254 = vsel %vm1200, %v2172, 0.0
        %2255 = vadd.xlane.f32.xlu0 %v2254
        %v2256 = vpop.xlane.xlu0 %2255
        %v2257 = vsel %vm1200, %v2173, 0.0
        %2258 = vadd.xlane.f32.xlu0 %v2257
        %v2259 = vpop.xlane.xlu0 %2258
        %v2260 = vsel %vm1200, %v2174, 0.0
        %2261 = vadd.xlane.f32.xlu0 %v2260
        %v2262 = vpop.xlane.xlu0 %2261
        %v2263 = vsel %vm1200, %v2175, 0.0
        %2264 = vadd.xlane.f32.xlu0 %v2263
        %v2265 = vpop.xlane.xlu0 %2264
        %v2266 = vsel %vm1200, %v2176, 0.0
        %2267 = vadd.xlane.f32.xlu0 %v2266
        %v2268 = vpop.xlane.xlu0 %2267
        %v2269 = vsel %vm1200, %v2177, 0.0
        %2270 = vadd.xlane.f32.xlu0 %v2269
        %v2271 = vpop.xlane.xlu0 %2270
        %v2272 = vsel %vm1200, %v2178, 0.0
        %2273 = vadd.xlane.f32.xlu0 %v2272
        %v2274 = vpop.xlane.xlu0 %2273
        %v2275 = vsel %vm1200, %v2179, 0.0
        %2276 = vadd.xlane.f32.xlu0 %v2275
        %v2277 = vpop.xlane.xlu0 %2276
        %v2278 = vsel %vm1200, %v2180, 0.0
        %2279 = vadd.xlane.f32.xlu0 %v2278
        %v2280 = vpop.xlane.xlu0 %2279
        %v2281 = vsel %vm1200, %v2181, 0.0
        %2282 = vadd.xlane.f32.xlu0 %v2281
        %v2283 = vpop.xlane.xlu0 %2282
        %v2284 = vsel %vm1200, %v2182, 0.0
        %2285 = vadd.xlane.f32.xlu0 %v2284
        %v2286 = vpop.xlane.xlu0 %2285
        %v2287 = vsel %vm1200, %v2183, 0.0
        %2288 = vadd.xlane.f32.xlu0 %v2287
        %v2289 = vpop.xlane.xlu0 %2288
        %v2290 = vsel %vm1200, %v2184, 0.0
        %2291 = vadd.xlane.f32.xlu0 %v2290
        %v2292 = vpop.xlane.xlu0 %2291
        %v2293 = vsel %vm1200, %v2185, 0.0
        %2294 = vadd.xlane.f32.xlu0 %v2293
        %v2295 = vpop.xlane.xlu0 %2294
        %v2296 = vsel %vm1200, %v2186, 0.0
        %2297 = vadd.xlane.f32.xlu0 %v2296
        %v2298 = vpop.xlane.xlu0 %2297
        %v2299 = vsel %vm1200, %v2187, 0.0
        %2300 = vadd.xlane.f32.xlu0 %v2299
        %v2301 = vpop.xlane.xlu0 %2300
        %v2302 = vsel %vm1200, %v2188, 0.0
        %2303 = vadd.xlane.f32.xlu0 %v2302
        %v2304 = vpop.xlane.xlu0 %2303
        %v2305 = vsel %vm1200, %v2189, 0.0
        %2306 = vadd.xlane.f32.xlu0 %v2305
        %v2307 = vpop.xlane.xlu0 %2306
        %v2308 = vsel %vm1200, %v2190, 0.0
        %2309 = vadd.xlane.f32.xlu0 %v2308
        %v2310 = vpop.xlane.xlu0 %2309
        %v2311 = vsel %vm1200, %v2191, 0.0
        %2312 = vadd.xlane.f32.xlu0 %v2311
        %v2313 = vpop.xlane.xlu0 %2312
        %v2314 = vsel %vm1200, %v2192, 0.0
        %2315 = vadd.xlane.f32.xlu0 %v2314
        %v2316 = vpop.xlane.xlu0 %2315
        %v2317 = vsel %vm1200, %v2193, 0.0
        %2318 = vadd.xlane.f32.xlu0 %v2317
        %v2319 = vpop.xlane.xlu0 %2318
        %v2320 = vsel %vm1200, %v2194, 0.0
        %2321 = vadd.xlane.f32.xlu0 %v2320
        %v2322 = vpop.xlane.xlu0 %2321
        %v2323 = vsel %vm1200, %v2195, 0.0
        %2324 = vadd.xlane.f32.xlu0 %v2323
        %v2325 = vpop.xlane.xlu0 %2324
        %v2326 = vsel %vm1200, %v2196, 0.0
        %2327 = vadd.xlane.f32.xlu0 %v2326
        %v2328 = vpop.xlane.xlu0 %2327
        %v2329 = vsel %vm1200, %v2197, 0.0
        %2330 = vadd.xlane.f32.xlu0 %v2329
        %v2331 = vpop.xlane.xlu0 %2330
        %v2332 = vsel %vm1200, %v2198, 0.0
        %2333 = vadd.xlane.f32.xlu0 %v2332
        %v2334 = vpop.xlane.xlu0 %2333
        %v2335 = vsel %vm1200, %v2199, 0.0
        %2336 = vadd.xlane.f32.xlu0 %v2335
        %v2337 = vpop.xlane.xlu0 %2336
        %v2338 = vsel %vm1200, %v2200, 0.0
        %2339 = vadd.xlane.f32.xlu0 %v2338
        %v2340 = vpop.xlane.xlu0 %2339
        %v2341 = vsel %vm1200, %v2201, 0.0
        %2342 = vadd.xlane.f32.xlu0 %v2341
        %v2343 = vpop.xlane.xlu0 %2342
        %v2344 = vsel %vm1200, %v2202, 0.0
        %2345 = vadd.xlane.f32.xlu0 %v2344
        %v2346 = vpop.xlane.xlu0 %2345
        %v2347 = vsel %vm1200, %v2203, 0.0
        %2348 = vadd.xlane.f32.xlu0 %v2347
        %v2349 = vpop.xlane.xlu0 %2348
        %v2350 = vsel %vm1200, %v2204, 0.0
        %2351 = vadd.xlane.f32.xlu0 %v2350
        %v2352 = vpop.xlane.xlu0 %2351
        %v2353 = vsel %vm1200, %v2205, 0.0
        %2354 = vadd.xlane.f32.xlu0 %v2353
        %v2355 = vpop.xlane.xlu0 %2354
        %v2356 = vsel %vm1200, %v2206, 0.0
        %2357 = vadd.xlane.f32.xlu0 %v2356
        %v2358 = vpop.xlane.xlu0 %2357
        %v2359 = vsel %vm1200, %v2207, 0.0
        %2360 = vadd.xlane.f32.xlu0 %v2359
        %v2361 = vpop.xlane.xlu0 %2360
        %v2362 = vsel %vm1200, %v2208, 0.0
        %2363 = vadd.xlane.f32.xlu0 %v2362
        %v2364 = vpop.xlane.xlu0 %2363
        %v2365 = vsel %vm1200, %v2209, 0.0
        %2366 = vadd.xlane.f32.xlu0 %v2365
        %v2367 = vpop.xlane.xlu0 %2366
        %v2368 = vsel %vm1200, %v2210, 0.0
        %2369 = vadd.xlane.f32.xlu0 %v2368
        %v2370 = vpop.xlane.xlu0 %2369
        %v2371 = vsel %vm1200, %v2211, 0.0
        %2372 = vadd.xlane.f32.xlu0 %v2371
        %v2373 = vpop.xlane.xlu0 %2372
        %v2374 = vsel %vm1200, %v2212, 0.0
        %2375 = vadd.xlane.f32.xlu0 %v2374
        %v2376 = vpop.xlane.xlu0 %2375
        %v2377 = vsel %vm1200, %v2213, 0.0
        %2378 = vadd.xlane.f32.xlu0 %v2377
        %v2379 = vpop.xlane.xlu0 %2378
        %v2380 = vsel %vm1200, %v2214, 0.0
        %2381 = vadd.xlane.f32.xlu0 %v2380
        %v2382 = vpop.xlane.xlu0 %2381
        %v2383 = vsel %vm1200, %v2215, 0.0
        %2384 = vadd.xlane.f32.xlu0 %v2383
        %v2385 = vpop.xlane.xlu0 %2384
        %v2386 = vsel %vm1200, %v2216, 0.0
        %2387 = vadd.xlane.f32.xlu0 %v2386
        %v2388 = vpop.xlane.xlu0 %2387
        %v2389 = vsel %vm1200, %v2217, 0.0
        %2390 = vadd.xlane.f32.xlu0 %v2389
        %v2391 = vpop.xlane.xlu0 %2390
        %v2392 = vsel %vm1200, %v2218, 0.0
        %2393 = vadd.xlane.f32.xlu0 %v2392
        %v2394 = vpop.xlane.xlu0 %2393
        %v2395 = vsel %vm1200, %v2219, 0.0
        %2396 = vadd.xlane.f32.xlu0 %v2395
        %v2397 = vpop.xlane.xlu0 %2396
        %v2398 = vsel %vm1200, %v2220, 0.0
        %2399 = vadd.xlane.f32.xlu0 %v2398
        %v2400 = vpop.xlane.xlu0 %2399
        %v2401 = vsel %vm1200, %v2221, 0.0
        %2402 = vadd.xlane.f32.xlu0 %v2401
        %v2403 = vpop.xlane.xlu0 %2402
        %v2404 = vsel %vm1200, %v2222, 0.0
        %2405 = vadd.xlane.f32.xlu0 %v2404
        %v2406 = vpop.xlane.xlu0 %2405
        %v2407 = vsel %vm1200, %v2223, 0.0
        %2408 = vadd.xlane.f32.xlu0 %v2407
        %v2409 = vpop.xlane.xlu0 %2408
        %v2410 = vsel %vm1200, %v2224, 0.0
        %2411 = vadd.xlane.f32.xlu0 %v2410
        %v2412 = vpop.xlane.xlu0 %2411
        %v2413 = vsel %vm1200, %v2225, 0.0
        %2414 = vadd.xlane.f32.xlu0 %v2413
        %v2415 = vpop.xlane.xlu0 %2414
        %v2416 = vsel %vm1200, %v2226, 0.0
        %2417 = vadd.xlane.f32.xlu0 %v2416
        %v2418 = vpop.xlane.xlu0 %2417
        %vm2419 = vcmask 7168
        %v2420 = vsel %vm2419, %v1973, %v2229
        %v2421 = vsel %vm2419, %v1976, %v2232
        %v2422 = vsel %vm2419, %v1979, %v2235
        %v2423 = vsel %vm2419, %v1982, %v2238
        %v2424 = vsel %vm2419, %v1985, %v2241
        %v2425 = vsel %vm2419, %v1988, %v2244
        %v2426 = vsel %vm2419, %v1991, %v2247
        %v2427 = vsel %vm2419, %v1994, %v2250
        %v2428 = vsel %vm2419, %v1997, %v2253
        %v2429 = vsel %vm2419, %v2000, %v2256
        %v2430 = vsel %vm2419, %v2003, %v2259
        %v2431 = vsel %vm2419, %v2006, %v2262
        %v2432 = vsel %vm2419, %v2009, %v2265
        %v2433 = vsel %vm2419, %v2012, %v2268
        %v2434 = vsel %vm2419, %v2015, %v2271
        %v2435 = vsel %vm2419, %v2018, %v2274
        %v2436 = vsel %vm2419, %v2021, %v2277
        %v2437 = vsel %vm2419, %v2024, %v2280
        %v2438 = vsel %vm2419, %v2027, %v2283
        %v2439 = vsel %vm2419, %v2030, %v2286
        %v2440 = vsel %vm2419, %v2033, %v2289
        %v2441 = vsel %vm2419, %v2036, %v2292
        %v2442 = vsel %vm2419, %v2039, %v2295
        %v2443 = vsel %vm2419, %v2042, %v2298
        %v2444 = vsel %vm2419, %v2045, %v2301
        %v2445 = vsel %vm2419, %v2048, %v2304
        %v2446 = vsel %vm2419, %v2051, %v2307
        %v2447 = vsel %vm2419, %v2054, %v2310
        %v2448 = vsel %vm2419, %v2057, %v2313
        %v2449 = vsel %vm2419, %v2060, %v2316
        %v2450 = vsel %vm2419, %v2063, %v2319
        %v2451 = vsel %vm2419, %v2066, %v2322
        %v2452 = vsel %vm2419, %v2069, %v2325
        %v2453 = vsel %vm2419, %v2072, %v2328
        %v2454 = vsel %vm2419, %v2075, %v2331
        %v2455 = vsel %vm2419, %v2078, %v2334
        %v2456 = vsel %vm2419, %v2081, %v2337
        %v2457 = vsel %vm2419, %v2084, %v2340
        %v2458 = vsel %vm2419, %v2087, %v2343
        %v2459 = vsel %vm2419, %v2090, %v2346
        %v2460 = vsel %vm2419, %v2093, %v2349
        %v2461 = vsel %vm2419, %v2096, %v2352
        %v2462 = vsel %vm2419, %v2099, %v2355
        %v2463 = vsel %vm2419, %v2102, %v2358
        %v2464 = vsel %vm2419, %v2105, %v2361
        %v2465 = vsel %vm2419, %v2108, %v2364
        %v2466 = vsel %vm2419, %v2111, %v2367
        %v2467 = vsel %vm2419, %v2114, %v2370
        %v2468 = vsel %vm2419, %v2117, %v2373
        %v2469 = vsel %vm2419, %v2120, %v2376
        %v2470 = vsel %vm2419, %v2123, %v2379
        %v2471 = vsel %vm2419, %v2126, %v2382
        %v2472 = vsel %vm2419, %v2129, %v2385
        %v2473 = vsel %vm2419, %v2132, %v2388
        %v2474 = vsel %vm2419, %v2135, %v2391
        %v2475 = vsel %vm2419, %v2138, %v2394
        %v2476 = vsel %vm2419, %v2141, %v2397
        %v2477 = vsel %vm2419, %v2144, %v2400
        %v2478 = vsel %vm2419, %v2147, %v2403
        %v2479 = vsel %vm2419, %v2150, %v2406
        %v2480 = vsel %vm2419, %v2153, %v2409
        %v2481 = vsel %vm2419, %v2156, %v2412
        %v2482 = vsel %vm2419, %v2159, %v2415
        %v2483 = vsel %vm2419, %v2162, %v2418
        %vm2484 = vcmask 15360
        %2485 = vst.msk [vmem:[%s346] sm:$0xff] %vm2484, %v2420
        %2486 = vst.msk [vmem:[%s346 + $0x8] sm:$0xff] %vm2484, %v2421
        %2487 = vst.msk [vmem:[%s346 + $0x10] sm:$0xff] %vm2484, %v2422
        %2488 = vst.msk [vmem:[%s346 + $0x18] sm:$0xff] %vm2484, %v2423
        %2489 = vst.msk [vmem:[%s346 + $0x20] sm:$0xff] %vm2484, %v2424
        %2490 = vst.msk [vmem:[%s346 + $0x28] sm:$0xff] %vm2484, %v2425
        %2491 = vst.msk [vmem:[%s346 + $0x30] sm:$0xff] %vm2484, %v2426
        %2492 = vst.msk [vmem:[%s346 + $0x38] sm:$0xff] %vm2484, %v2427
        %2493 = vst.msk [vmem:[%s346 + $0x40] sm:$0xff] %vm2484, %v2428
        %2494 = vst.msk [vmem:[%s346 + $0x48] sm:$0xff] %vm2484, %v2429
        %2495 = vst.msk [vmem:[%s346 + $0x50] sm:$0xff] %vm2484, %v2430
        %2496 = vst.msk [vmem:[%s346 + $0x58] sm:$0xff] %vm2484, %v2431
        %2497 = vst.msk [vmem:[%s346 + $0x60] sm:$0xff] %vm2484, %v2432
        %2498 = vst.msk [vmem:[%s346 + $0x68] sm:$0xff] %vm2484, %v2433
        %2499 = vst.msk [vmem:[%s346 + $0x70] sm:$0xff] %vm2484, %v2434
        %2500 = vst.msk [vmem:[%s346 + $0x78] sm:$0xff] %vm2484, %v2435
        %2501 = vst.msk [vmem:[%s346 + $0x80] sm:$0xff] %vm2484, %v2436
        %2502 = vst.msk [vmem:[%s346 + $0x88] sm:$0xff] %vm2484, %v2437
        %2503 = vst.msk [vmem:[%s346 + $0x90] sm:$0xff] %vm2484, %v2438
        %2504 = vst.msk [vmem:[%s346 + $0x98] sm:$0xff] %vm2484, %v2439
        %2505 = vst.msk [vmem:[%s346 + $0xa0] sm:$0xff] %vm2484, %v2440
        %2506 = vst.msk [vmem:[%s346 + $0xa8] sm:$0xff] %vm2484, %v2441
        %2507 = vst.msk [vmem:[%s346 + $0xb0] sm:$0xff] %vm2484, %v2442
        %2508 = vst.msk [vmem:[%s346 + $0xb8] sm:$0xff] %vm2484, %v2443
        %2509 = vst.msk [vmem:[%s346 + $0xc0] sm:$0xff] %vm2484, %v2444
        %2510 = vst.msk [vmem:[%s346 + $0xc8] sm:$0xff] %vm2484, %v2445
        %2511 = vst.msk [vmem:[%s346 + $0xd0] sm:$0xff] %vm2484, %v2446
        %2512 = vst.msk [vmem:[%s346 + $0xd8] sm:$0xff] %vm2484, %v2447
        %2513 = vst.msk [vmem:[%s346 + $0xe0] sm:$0xff] %vm2484, %v2448
        %2514 = vst.msk [vmem:[%s346 + $0xe8] sm:$0xff] %vm2484, %v2449
        %2515 = vst.msk [vmem:[%s346 + $0xf0] sm:$0xff] %vm2484, %v2450
        %2516 = vst.msk [vmem:[%s346 + $0xf8] sm:$0xff] %vm2484, %v2451
        %2517 = vst.msk [vmem:[%s346 + $0x100] sm:$0xff] %vm2484, %v2452
        %2518 = vst.msk [vmem:[%s346 + $0x108] sm:$0xff] %vm2484, %v2453
        %2519 = vst.msk [vmem:[%s346 + $0x110] sm:$0xff] %vm2484, %v2454
        %2520 = vst.msk [vmem:[%s346 + $0x118] sm:$0xff] %vm2484, %v2455
        %2521 = vst.msk [vmem:[%s346 + $0x120] sm:$0xff] %vm2484, %v2456
        %2522 = vst.msk [vmem:[%s346 + $0x128] sm:$0xff] %vm2484, %v2457
        %2523 = vst.msk [vmem:[%s346 + $0x130] sm:$0xff] %vm2484, %v2458
        %2524 = vst.msk [vmem:[%s346 + $0x138] sm:$0xff] %vm2484, %v2459
        %2525 = vst.msk [vmem:[%s346 + $0x140] sm:$0xff] %vm2484, %v2460
        %2526 = vst.msk [vmem:[%s346 + $0x148] sm:$0xff] %vm2484, %v2461
        %2527 = vst.msk [vmem:[%s346 + $0x150] sm:$0xff] %vm2484, %v2462
        %2528 = vst.msk [vmem:[%s346 + $0x158] sm:$0xff] %vm2484, %v2463
        %2529 = vst.msk [vmem:[%s346 + $0x160] sm:$0xff] %vm2484, %v2464
        %2530 = vst.msk [vmem:[%s346 + $0x168] sm:$0xff] %vm2484, %v2465
        %2531 = vst.msk [vmem:[%s346 + $0x170] sm:$0xff] %vm2484, %v2466
        %2532 = vst.msk [vmem:[%s346 + $0x178] sm:$0xff] %vm2484, %v2467
        %2533 = vst.msk [vmem:[%s346 + $0x180] sm:$0xff] %vm2484, %v2468
        %2534 = vst.msk [vmem:[%s346 + $0x188] sm:$0xff] %vm2484, %v2469
        %2535 = vst.msk [vmem:[%s346 + $0x190] sm:$0xff] %vm2484, %v2470
        %2536 = vst.msk [vmem:[%s346 + $0x198] sm:$0xff] %vm2484, %v2471
        %2537 = vst.msk [vmem:[%s346 + $0x1a0] sm:$0xff] %vm2484, %v2472
        %2538 = vst.msk [vmem:[%s346 + $0x1a8] sm:$0xff] %vm2484, %v2473
        %2539 = vst.msk [vmem:[%s346 + $0x1b0] sm:$0xff] %vm2484, %v2474
        %2540 = vst.msk [vmem:[%s346 + $0x1b8] sm:$0xff] %vm2484, %v2475
        %2541 = vst.msk [vmem:[%s346 + $0x1c0] sm:$0xff] %vm2484, %v2476
        %2542 = vst.msk [vmem:[%s346 + $0x1c8] sm:$0xff] %vm2484, %v2477
        %2543 = vst.msk [vmem:[%s346 + $0x1d0] sm:$0xff] %vm2484, %v2478
        %2544 = vst.msk [vmem:[%s346 + $0x1d8] sm:$0xff] %vm2484, %v2479
        %2545 = vst.msk [vmem:[%s346 + $0x1e0] sm:$0xff] %vm2484, %v2480
        %2546 = vst.msk [vmem:[%s346 + $0x1e8] sm:$0xff] %vm2484, %v2481
        %2547 = vst.msk [vmem:[%s346 + $0x1f0] sm:$0xff] %vm2484, %v2482
        %2548 = vst.msk [vmem:[%s346 + $0x1f8] sm:$0xff] %vm2484, %v2483
        %p2549 = scmp.lt.s32.totalorder %s24, 1
        %s2550 = scalar_select %p2549, %s24, 1
        %p2551 = scmp.lt.s32.totalorder %s25, 0
        %s2552 = scalar_select %p2551, %s25, 0
        %s2553 = smul.addr %s2550, 32
        %s2554 = sadd.s32 %s2552, %s2553
        %s2555 = smul.addr %s2554, 8
        %s2556 = scalar_lea.vmem %s6, %s2555
        %p2557 = scmp.lt.s32.totalorder %s24, 1
        %s2558 = scalar_select %p2557, %s24, 1
        %p2559 = scmp.lt.s32.totalorder %s25, 0
        %s2560 = scalar_select %p2559, %s25, 0
        %s2561 = smul.addr %s2560, 64
        %s2562 = smul.addr %s2558, 64
        %s2563 = sadd.s32 %s2561, %s2562
        %s2564 = smul.addr %s2563, 8
        %s2565 = scalar_lea.vmem %s7, %s2564
        // Predicated region
        $region49: #{tpu_custom_call.1} parent=43 // pred_check
          %p2566 = pneg %p185
        $region50: #{tpu_custom_call.1} parent=43 // pred_check_branch
          %2568 = sbr.rel (%p2566) target = $region52
        $region51: #{tpu_custom_call.1} parent=43 // pred_region
          _
        $region52: #{tpu_custom_call.1} parent=43 // pred_fallthru
          _
        // Predicated region
        $region53: #{tpu_custom_call.1} parent=43 // pred_check
          %p2569 = pneg %p213
        $region54: #{tpu_custom_call.1} parent=43 // pred_check_branch
          %2571 = sbr.rel (%p2569) target = $region56
        $region55: #{tpu_custom_call.1} parent=43 // pred_region
          _
        $region56: #{tpu_custom_call.1} parent=43 // pred_fallthru
          _
      $region44: #{tpu_custom_call.1} parent=5 // pred_fallthru
        _
      %p2572 = scmp.le.s32.totalorder 2, %s15
      // Predicated region
      $region57: #{tpu_custom_call.1} parent=5 // pred_check
        %p2573 = pneg %p2572
      $region58: #{tpu_custom_call.1} parent=5 // pred_check_branch
        %2575 = sbr.rel (%p2573) target = $region60
      $region59: #{tpu_custom_call.1} parent=5 // pred_region
        %s2576 = ssub.s32 %s15, 2
        // Predicated region
        $region61: #{tpu_custom_call.1} parent=59 // pred_check
          %p2577 = pneg %p191
        $region62: #{tpu_custom_call.1} parent=59 // pred_check_branch
          %2579 = sbr.rel (%p2577) target = $region64
        $region63: #{tpu_custom_call.1} parent=59 // pred_region
          %p2580 = scmp.lt.s32.totalorder %s26, 1
          %s2581 = scalar_select %p2580, %s26, 1
          %p2582 = scmp.lt.s32.totalorder %s27, 0
          %s2583 = scalar_select %p2582, %s27, 0
          %s2584 = smul.addr %s2581, 32
          %s2585 = sadd.s32 %s2583, %s2584
          %s2586 = smul.addr %s2585, 8
          %s2587 = scalar_lea.vmem %s6, %s2586
        $region64: #{tpu_custom_call.1} parent=59 // pred_fallthru
          _
        // Predicated region
        $region65: #{tpu_custom_call.1} parent=59 // pred_check
          %p2588 = pneg %p219
        $region66: #{tpu_custom_call.1} parent=59 // pred_check_branch
          %2590 = sbr.rel (%p2588) target = $region68
        $region67: #{tpu_custom_call.1} parent=59 // pred_region
          %p2591 = scmp.lt.s32.totalorder %s26, 1
          %s2592 = scalar_select %p2591, %s26, 1
          %p2593 = scmp.lt.s32.totalorder %s27, 0
          %s2594 = scalar_select %p2593, %s27, 0
          %s2595 = smul.addr %s2594, 64
          %s2596 = smul.addr %s2592, 64
          %s2597 = sadd.s32 %s2595, %s2596
          %s2598 = smul.addr %s2597, 8
          %s2599 = scalar_lea.vmem %s7, %s2598
        $region68: #{tpu_custom_call.1} parent=59 // pred_fallthru
          _
      $region60: #{tpu_custom_call.1} parent=5 // pred_fallthru
        _
    $region6: #{tpu_custom_call.1} parent=1 // loop_footer
      %s19 = sadd.s32 1, %s15
    $region7: #{tpu_custom_call.1} parent=1 // loop_footer_branch
      %14 = sbr.rel target = $region3
    $region8: #{tpu_custom_call.1} parent=1 // loop_exit
      _
    %2600 = vsyncpa [#allocation3], 1
    %s2601 = scalar_lea.sflag [#allocation3], 1
    %2602 = vsyncpa %s2601, 1

</llo_original>
